<compile_context>
chip_gen: v7x
topology: tpu7x:2x2x1
jax: 0.10.0
libtpu: 0.0.40
codegen_flags: <defaults>
</compile_context>

<pallas_src>
import functools

import jax
import jax.numpy as jnp
import numpy as np
from jax.experimental import pallas as pl
from jax.experimental.pallas import tpu as pltpu


def _round_up(x, m):
    return (x + m - 1) // m * m


# ----------------------------------------------------------------------------- #
# Kernel 1: fused  act(A_tile) @ W_tile  (bf16 MXU, f32 accum)  + per-tile BN sums #
# ----------------------------------------------------------------------------- #
def _gemm_act_stats_kernel(a_ref, w_ref, y_ref, st_ref, acc_ref, *, neg_slope):
    k = pl.program_id(2)

    @pl.when(k == 0)
    def _init():
        acc_ref[...] = jnp.zeros_like(acc_ref)

    # Activation in f32 vregs (v5e VPU has no bf16 path); zero-padded rows/cols of A
    # stay zero under LeakyReLU/ReLU, so fusing here is exact.
    a = a_ref[...].astype(jnp.float32)
    a = jnp.where(a >= 0, a, neg_slope * a)
    acc_ref[...] += jnp.dot(a.astype(jnp.bfloat16), w_ref[...],
                            preferred_element_type=jnp.float32)

    @pl.when(k == pl.num_programs(2) - 1)
    def _finalize():
        y = acc_ref[...]
        y_ref[...] = y.astype(y_ref.dtype)
        s = jnp.sum(y, axis=0, keepdims=True)          # (1, Cp)
        ss = jnp.sum(y * y, axis=0, keepdims=True)     # (1, Cp)
        pad = jnp.zeros((6, y.shape[1]), jnp.float32)
        st_ref[...] = jnp.concatenate([s, ss, pad], axis=0)   # (8, Cp) full store


# ----------------------------------------------------------------------------- #
# Kernel 2: lightweight normalization pass  y*scale + bias                        #
# ----------------------------------------------------------------------------- #
def _scale_bias_kernel(y_ref, sc_ref, bi_ref, o_ref):
    o_ref[...] = (y_ref[...].astype(jnp.float32) * sc_ref[...]
                  + bi_ref[...]).astype(o_ref.dtype)


# ----------------------------------------------------------------------------- #
# Wrapper: tiled GEMM + training-mode BatchNorm (two Pallas passes)               #
# ----------------------------------------------------------------------------- #
def _conv_gemm_bn(a, w, gamma, beta, count, *, neg_slope, eps=1e-5,
                  out_dtype=jnp.float32):
    """a: (P, M, K) activations (pre-activation patch matrices, zero-padded rows ok)
       w: (P, K, C) per-phase weight matrices
       count: number of REAL rows across all phases (BatchNorm population size)."""
    p, m, k = a.shape
    c = w.shape[-1]

    cp = _round_up(c, 128)                      # lane-dense output tiles
    tk = min(512, _round_up(k, 128))
    kp = _round_up(_round_up(k, 128), tk)
    tm = min(512, _round_up(m, 16))             # bf16 sublane packing
    mp = _round_up(m, tm)
    gm, gk = mp // tm, kp // tk

    # bf16 inputs (native MXU, half the A/W DMA bytes); f32 accumulation in-kernel.
    a_p = jnp.pad(a.astype(jnp.bfloat16), ((0, 0), (0, mp - m), (0, kp - k)))
    w_p = jnp.pad(w.astype(jnp.bfloat16), ((0, 0), (0, kp - k), (0, cp - c)))

    cost = pl.CostEstimate(
        flops=2 * p * mp * kp * cp,
        transcendentals=0,
        bytes_accessed=int(a_p.size * 2 + w_p.size * 2 * gm
                           + p * mp * cp * 2 + p * gm * 8 * cp * 4),
    )

    kern = functools.partial(_gemm_act_stats_kernel, neg_slope=neg_slope)
    y, stats = pl.pallas_call(
        kern,
        out_shape=(jax.ShapeDtypeStruct((p, mp, cp), jnp.bfloat16),
                   jax.ShapeDtypeStruct((p, gm, 8, cp), jnp.float32)),
        grid=(p, gm, gk),
        in_specs=[
            pl.BlockSpec((None, tm, tk), lambda pp, i, kk: (pp, i, kk)),
            pl.BlockSpec((None, tk, cp), lambda pp, i, kk: (pp, kk, 0)),
        ],
        out_specs=(
            pl.BlockSpec((None, tm, cp), lambda pp, i, kk: (pp, i, 0)),
            pl.BlockSpec((None, None, 8, cp), lambda pp, i, kk: (pp, i, 0, 0)),
        ),
        scratch_shapes=[pltpu.VMEM((tm, cp), jnp.float32)],
        compiler_params=pltpu.CompilerParams(
            dimension_semantics=("parallel", "parallel", "arbitrary"),
            vmem_limit_bytes=32 * 1024 * 1024),
        cost_estimate=cost,
    )(a_p, w_p)

    # Combine per-tile partial sums (tiny (P*Gm, Cp) reduction) and fold BN into a
    # single scale/bias.  Zero-padded rows contribute nothing to the sums; `count`
    # is the true population size.
    total = jnp.sum(stats[:, :, 0, :], axis=(0, 1))
    total_sq = jnp.sum(stats[:, :, 1, :], axis=(0, 1))
    mean = total / count
    var = jnp.maximum(total_sq / count - mean * mean, 0.0)
    gamma_p = jnp.pad(gamma.astype(jnp.float32), (0, cp - c))
    beta_p = jnp.pad(beta.astype(jnp.float32), (0, cp - c))
    scale = gamma_p * jax.lax.rsqrt(var + eps)
    bias = beta_p - mean * scale

    # Mem-bound pass: merge row tiles (must divide rows) up to a VMEM budget
    # (~12 B/elem live: bf16 in + f32 out, double-buffered).
    rows = p * mp
    tmn = tm
    while rows % (2 * tmn) == 0 and (2 * tmn) * cp * 12 <= (12 << 20):
        tmn *= 2

    y2 = y.reshape(rows, cp)
    out = pl.pallas_call(
        _scale_bias_kernel,
        out_shape=jax.ShapeDtypeStruct((rows, cp), out_dtype),
        grid=(rows // tmn,),
        in_specs=[
            pl.BlockSpec((tmn, cp), lambda i: (i, 0)),
            pl.BlockSpec((1, cp), lambda i: (0, 0)),   # resident, not re-fetched
            pl.BlockSpec((1, cp), lambda i: (0, 0)),
        ],
        out_specs=pl.BlockSpec((tmn, cp), lambda i: (i, 0)),
        compiler_params=pltpu.CompilerParams(
            dimension_semantics=("parallel",),
            vmem_limit_bytes=32 * 1024 * 1024),
    )(y2, scale.reshape(1, cp), bias.reshape(1, cp))

    return out.reshape(p, mp, cp)[:, :m, :c]


# ----------------------------------------------------------------------------- #
# Glue: channels-last patch construction (plain JAX slicing/reshapes, bf16)       #
# ----------------------------------------------------------------------------- #
# TODO(synk): the patch matrices below are still materialized in HBM by XLA (now in
# bf16); an in-kernel DMA gather (pl.ANY input + manual copies) would cut that
# traffic further but stride-2 windows are not expressible via BlockSpec index_maps.
def _im2col_down(x):
    """NHWC x -> patches for Conv2d(k=4, stride=2, pad=1). Columns are (tap, c)."""
    n, h, w, c = x.shape
    xp = jnp.pad(x, ((0, 0), (1, 1), (1, 1), (0, 0)))
    ho, wo = h // 2, w // 2
    taps = [xp[:, i:i + 2 * ho:2, j:j + 2 * wo:2, :]
            for i in range(4) for j in range(4)]
    p = jnp.stack(taps, axis=3)                       # (N, Ho, Wo, 16, C)
    return p.reshape(n * ho * wo, 16 * c), (n, ho, wo)


def _polyphase_patches(s):
    """NHWC s -> (4, N*Hi*Wi, 4*C) patches; phase p=(r,c) produces output pixels
       (2y+r, 2x+c) of the stride-2 ConvTranspose."""
    n, hi, wi, c = s.shape
    sp = jnp.pad(s, ((0, 0), (1, 1), (1, 1), (0, 0)))
    phases = []
    for r in range(2):
        for cc in range(2):
            taps = [sp[:, r + a:r + a + hi, cc + b:cc + b + wi, :]
                    for a in range(2) for b in range(2)]
            ph = jnp.stack(taps, axis=3)              # (N, Hi, Wi, 4, C)
            phases.append(ph.reshape(n * hi * wi, 4 * c))
    return jnp.stack(phases, axis=0), (n, hi, wi)


def _polyphase_weights(w_t):
    """w_t: ConvTranspose2d weight (Cin2, Cout, 4, 4) -> (4, 4*Cin2, Cout).
       Phase (r,c), tap (a,b) uses kernel element (ky, kx) = (3-r-2a, 3-c-2b)."""
    ci2, cout = w_t.shape[0], w_t.shape[1]
    ws = []
    for r in range(2):
        for cc in range(2):
            sub = w_t[:, :, [3 - r, 1 - r], :][:, :, :, [3 - cc, 1 - cc]]
            ws.append(sub.transpose(2, 3, 0, 1).reshape(4 * ci2, cout))
    return jnp.stack(ws, axis=0)


# ----------------------------------------------------------------------------- #
# UnetSkipConnBlock forward (middle branch)                                       #
# ----------------------------------------------------------------------------- #
def unet_skip_conn_block(x_nchw, params, submodule):
    """down: LeakyReLU(0.2) -> Conv2d(input_nc, inner_nc, 4, 2, 1, bias=False) -> BN
       sub : submodule (NHWC in/out; inner_nc -> 2*inner_nc channels, same spatial)
       up  : ReLU -> ConvTranspose2d(2*inner_nc, outer_nc, 4, 2, 1, bias=False) -> BN
       out : cat([x, up], channel)"""
    n, cin, h, w = x_nchw.shape
    inner_nc = params["w_down"].shape[0]
    outer_nc = params["w_up"].shape[1]
    x = x_nchw.transpose(0, 2, 3, 1)                      # NHWC once per block

    # ---- down path (LeakyReLU fused inside the Pallas GEMM) ----
    # bf16 cast BEFORE im2col: patch matrix (16x input size) lives in HBM at half
    # the bytes; the MXU saw bf16-rounded inputs either way (bit-identical result).
    a_down, (_, ho, wo) = _im2col_down(x.astype(jnp.bfloat16))
    w_down = params["w_down"].transpose(2, 3, 1, 0).reshape(16 * cin, inner_nc)
    m_down = n * ho * wo
    d = _conv_gemm_bn(a_down[None], w_down[None], params["gamma_down"],
                      params["beta_down"], m_down, neg_slope=0.2)
    d = d[0].reshape(n, ho, wo, inner_nc)                 # NHWC

    # ---- submodule (external nested U-Net block) ----
    s = submodule(d)                                      # (N, Ho, Wo, 2*inner_nc)

    # ---- up path: polyphase ConvTranspose (ReLU fused inside the Pallas GEMM) ----
    a_up, _ = _polyphase_patches(s.astype(jnp.bfloat16))  # (4, M, 4*Ci2) bf16
    w_up = _polyphase_weights(params["w_up"])             # (4, 4*Ci2, outer_nc)
    m_up = n * ho * wo
    u = _conv_gemm_bn(a_up, w_up, params["gamma_up"], params["beta_up"],
                      4 * m_up, neg_slope=0.0)            # (4, M, outer_nc)
    u = u.reshape(2, 2, n, ho, wo, outer_nc).transpose(2, 3, 0, 4, 1, 5)
    u = u.reshape(n, 2 * ho, 2 * wo, outer_nc)            # NHWC, full resolution

    out = jnp.concatenate([x, u], axis=-1)                # skip connection
    return out.transpose(0, 3, 1, 2)                      # NCHW at block boundary


# ----------------------------------------------------------------------------- #
# Pure-JAX reference (f32, HIGHEST precision) for a sanity check                  #
# ----------------------------------------------------------------------------- #
def _bn_ref(y, gamma, beta, eps=1e-5):
    mean = y.mean(axis=(0, 2, 3), keepdims=True)
    var = jnp.square(y - mean).mean(axis=(0, 2, 3), keepdims=True)
    return (y - mean) * jax.lax.rsqrt(var + eps) * gamma.reshape(1, -1, 1, 1) \
        + beta.reshape(1, -1, 1, 1)


def reference_forward(x, params, submodule_nchw):
    hi = jax.lax.Precision.HIGHEST
    d = jnp.where(x >= 0, x, 0.2 * x)
    d = jax.lax.conv_general_dilated(d, params["w_down"], (2, 2), ((1, 1), (1, 1)),
                                     dimension_numbers=("NCHW", "OIHW", "NCHW"),
                                     precision=hi)
    d = _bn_ref(d, params["gamma_down"], params["beta_down"])
    s = submodule_nchw(d)
    u = jnp.maximum(s, 0.0)
    w_conv = jnp.flip(params["w_up"], axis=(2, 3)).transpose(1, 0, 2, 3)
    u = jax.lax.conv_general_dilated(u, w_conv, (1, 1), ((2, 2), (2, 2)),
                                     lhs_dilation=(2, 2),
                                     dimension_numbers=("NCHW", "OIHW", "NCHW"),
                                     precision=hi)
    u = _bn_ref(u, params["gamma_up"], params["beta_up"])
    return jnp.concatenate([x, u], axis=1)


if __name__ == "__main__":
    key = jax.random.PRNGKey(0)
    N, outer_nc, inner_nc, H, W = 2, 4, 8, 16, 16          # input_nc defaults to outer_nc
    k1, k2, k3, k4, k5, k6, k7 = jax.random.split(key, 7)

    x = jax.random.normal(k1, (N, outer_nc, H, W), jnp.float32)
    params = {
        "w_down": 0.1 * jax.random.normal(k2, (inner_nc, outer_nc, 4, 4), jnp.float32),
        "gamma_down": 1.0 + 0.1 * jax.random.normal(k3, (inner_nc,), jnp.float32),
        "beta_down": 0.1 * jax.random.normal(k4, (inner_nc,), jnp.float32),
        "w_up": 0.1 * jax.random.normal(k5, (2 * inner_nc, outer_nc, 4, 4), jnp.float32),
        "gamma_up": 1.0 + 0.1 * jax.random.normal(k6, (outer_nc,), jnp.float32),
        "beta_up": 0.1 * jax.random.normal(k7, (outer_nc,), jnp.float32),
    }

    # TODO(synk): the submodule is an external nn.Module (the nested U-Net block);
    # it is stood in by a deterministic channel-duplicating skip.
    submodule_nhwc = lambda y: jnp.concatenate([y, y], axis=-1)

    fwd = jax.jit(functools.partial(unet_skip_conn_block, submodule=submodule_nhwc))
    out = fwd(x, params)
    jax.block_until_ready(out)

    assert out.shape == (N, 2 * outer_nc, H, W), out.shape
    ref = reference_forward(x, params, lambda y: jnp.concatenate([y, y], axis=1))
    max_diff = float(jnp.max(jnp.abs(out - ref)))
    assert np.isfinite(np.asarray(out)).all()
    # bf16 MXU inputs (perf guidance) loosen the match vs. the f32 HIGHEST reference.
    assert max_diff < 7.5e-2, f"mismatch vs reference: max|diff|={max_diff}"

    print("KERNEL_OK")
</pallas_src>

<mosaic_0001>
module attributes {stable_mosaic.version = 11 : i64} {
  func.func @_scale_bias_kernel(%arg0: i32, %arg1: memref<128x128xbf16, #tpu.memory_space<vmem>>, %arg2: memref<1x128xf32, #tpu.memory_space<vmem>>, %arg3: memref<1x128xf32, #tpu.memory_space<vmem>>, %arg4: memref<128x128xf32, #tpu.memory_space<vmem>>) attributes {dimension_semantics = [#tpu.dimension_semantics<parallel>], iteration_bounds = array<i64: 1>, scalar_prefetch = 0 : i64, scratch_operands = 0 : i64, tpu.core_type = #tpu.core_type<tc>, window_params = [{transform_indices = @transform_0, window_bounds = array<i64: 128, 128>}, {pipeline_mode = #tpu.pipeline_mode<synchronous>, transform_indices = @transform_1, window_bounds = array<i64: 1, 128>}, {pipeline_mode = #tpu.pipeline_mode<synchronous>, transform_indices = @transform_2, window_bounds = array<i64: 1, 128>}, {transform_indices = @transform_3, window_bounds = array<i64: 128, 128>}]} {
    %c0 = arith.constant 0 : index
    %c0_0 = arith.constant 0 : index
    %0 = vector.load %arg1[%c0, %c0_0] : memref<128x128xbf16, #tpu.memory_space<vmem>>, vector<128x128xbf16>
    %1 = arith.extf %0 : vector<128x128xbf16> to vector<128x128xf32>
    %c0_1 = arith.constant 0 : index
    %c0_2 = arith.constant 0 : index
    %2 = vector.load %arg2[%c0_1, %c0_2] : memref<1x128xf32, #tpu.memory_space<vmem>>, vector<1x128xf32>
    %3 = vector.broadcast %2 : vector<1x128xf32> to vector<128x128xf32>
    %4 = arith.mulf %1, %3 : vector<128x128xf32>
    %c0_3 = arith.constant 0 : index
    %c0_4 = arith.constant 0 : index
    %5 = vector.load %arg3[%c0_3, %c0_4] : memref<1x128xf32, #tpu.memory_space<vmem>>, vector<1x128xf32>
    %6 = vector.broadcast %5 : vector<1x128xf32> to vector<128x128xf32>
    %7 = arith.addf %4, %6 : vector<128x128xf32>
    %c0_5 = arith.constant 0 : index
    %c0_6 = arith.constant 0 : index
    %8 = vector.load %arg4[%c0_5, %c0_6] : memref<128x128xf32, #tpu.memory_space<vmem>>, vector<128x128xf32>
    tpu.vector_store %arg4[%c0_5, %c0_6], %7 {strides = array<i32>} : memref<128x128xf32, #tpu.memory_space<vmem>>, vector<128x128xf32>,
    return
  }
  func.func @transform_0(%arg0: i32) -> (i32, i32) {
    %c0_i32 = arith.constant 0 : i32
    %c0_i32_0 = arith.constant 0 : i32
    return %arg0, %c0_i32 : i32, i32
  }
  func.func @transform_1(%arg0: i32) -> (i32, i32) {
    %c0_i32 = arith.constant 0 : i32
    %c0_i32_0 = arith.constant 0 : i32
    %c0_i32_1 = arith.constant 0 : i32
    return %c0_i32, %c0_i32_0 : i32, i32
  }
  func.func @transform_2(%arg0: i32) -> (i32, i32) {
    %c0_i32 = arith.constant 0 : i32
    %c0_i32_0 = arith.constant 0 : i32
    %c0_i32_1 = arith.constant 0 : i32
    return %c0_i32, %c0_i32_0 : i32, i32
  }
  func.func @transform_3(%arg0: i32) -> (i32, i32) {
    %c0_i32 = arith.constant 0 : i32
    %c0_i32_0 = arith.constant 0 : i32
    return %arg0, %c0_i32 : i32, i32
  }
}

module attributes {stable_mosaic.version = 11 : i64} {
  func.func @_gemm_act_stats_kernel(%arg0: i32, %arg1: i32, %arg2: i32, %arg3: memref<1x128x128xbf16, #tpu.memory_space<vmem>>, %arg4: memref<1x128x128xbf16, #tpu.memory_space<vmem>>, %arg5: memref<1x128x128xbf16, #tpu.memory_space<vmem>>, %arg6: memref<1x1x8x128xf32, #tpu.memory_space<vmem>>, %arg7: memref<128x128xf32, #tpu.memory_space<vmem>>) attributes {dimension_semantics = [#tpu.dimension_semantics<parallel>, #tpu.dimension_semantics<parallel>, #tpu.dimension_semantics<arbitrary>], iteration_bounds = array<i64: 1, 1, 1>, scalar_prefetch = 0 : i64, scratch_operands = 1 : i64, tpu.core_type = #tpu.core_type<tc>, window_params = [{transform_indices = @transform_0, window_bounds = array<i64: 1, 128, 128>}, {transform_indices = @transform_1, window_bounds = array<i64: 1, 128, 128>}, {transform_indices = @transform_2, window_bounds = array<i64: 1, 128, 128>}, {transform_indices = @transform_3, window_bounds = array<i64: 1, 1, 8, 128>}]} {
    %c0_i32 = arith.constant 0 : i32
    %0 = arith.cmpi eq, %arg2, %c0_i32 : i32
    %1 = arith.extui %0 : i1 to i32
    %c0_i32_0 = arith.constant 0 : i32
    %2 = arith.cmpi ne, %1, %c0_i32_0 : i32
    scf.if %2 {
      %cst_14 = arith.constant 0.000000e+00 : f32
      %21 = vector.broadcast %cst_14 : f32 to vector<128x128xf32>
      %c0_15 = arith.constant 0 : index
      %c0_16 = arith.constant 0 : index
      %22 = vector.load %arg7[%c0_15, %c0_16] : memref<128x128xf32, #tpu.memory_space<vmem>>, vector<128x128xf32>
      tpu.vector_store %arg7[%c0_15, %c0_16], %21 {strides = array<i32>} : memref<128x128xf32, #tpu.memory_space<vmem>>, vector<128x128xf32>,
    } else {
    }
    %c0 = arith.constant 0 : index
    %c0_1 = arith.constant 0 : index
    %c0_2 = arith.constant 0 : index
    %3 = vector.load %arg3[%c0, %c0_1, %c0_2] : memref<1x128x128xbf16, #tpu.memory_space<vmem>>, vector<1x128x128xbf16>
    %4 = vector.shape_cast %3 : vector<1x128x128xbf16> to vector<128x128xbf16>
    %5 = arith.extf %4 : vector<128x128xbf16> to vector<128x128xf32>
    %cst = arith.constant 0.000000e+00 : f32
    %6 = vector.broadcast %cst : f32 to vector<128x128xf32>
    %7 = arith.cmpf oge, %5, %6 : vector<128x128xf32>
    %cst_3 = arith.constant 2.000000e-01 : f32
    %8 = vector.broadcast %cst_3 : f32 to vector<128x128xf32>
    %9 = arith.mulf %8, %5 : vector<128x128xf32>
    %10 = arith.select %7, %5, %9 : vector<128x128xi1>, vector<128x128xf32>
    %c0_4 = arith.constant 0 : index
    %c0_5 = arith.constant 0 : index
    %11 = vector.load %arg7[%c0_4, %c0_5] : memref<128x128xf32, #tpu.memory_space<vmem>>, vector<128x128xf32>
    %12 = arith.truncf %10 : vector<128x128xf32> to vector<128x128xbf16>
    %c0_6 = arith.constant 0 : index
    %c0_7 = arith.constant 0 : index
    %c0_8 = arith.constant 0 : index
    %13 = vector.load %arg4[%c0_6, %c0_7, %c0_8] : memref<1x128x128xbf16, #tpu.memory_space<vmem>>, vector<1x128x128xbf16>
    %14 = vector.shape_cast %13 : vector<1x128x128xbf16> to vector<128x128xbf16>
    %cst_9 = arith.constant dense<0.000000e+00> : vector<128x128xf32>
    %15 = tpu.matmul %12, %14, %cst_9 {dimension_numbers = #tpu.dot_dimension_numbers<[1], [0], [0], [1], [0, 0, 1, 1], [], []>} : vector<128x128xbf16>, vector<128x128xbf16>, vector<128x128xf32> -> vector<128x128xf32>
    %16 = arith.addf %11, %15 : vector<128x128xf32>
    %c0_10 = arith.constant 0 : index
    %c0_11 = arith.constant 0 : index
    %17 = vector.load %arg7[%c0_10, %c0_11] : memref<128x128xf32, #tpu.memory_space<vmem>>, vector<128x128xf32>
    tpu.vector_store %arg7[%c0_10, %c0_11], %16 {strides = array<i32>} : memref<128x128xf32, #tpu.memory_space<vmem>>, vector<128x128xf32>,
    %c0_i32_12 = arith.constant 0 : i32
    %18 = arith.cmpi eq, %arg2, %c0_i32_12 : i32
    %19 = arith.extui %18 : i1 to i32
    %c0_i32_13 = arith.constant 0 : i32
    %20 = arith.cmpi ne, %19, %c0_i32_13 : i32
    scf.if %20 {
      %c0_14 = arith.constant 0 : index
      %c0_15 = arith.constant 0 : index
      %21 = vector.load %arg7[%c0_14, %c0_15] : memref<128x128xf32, #tpu.memory_space<vmem>>, vector<128x128xf32>
      %22 = arith.truncf %21 : vector<128x128xf32> to vector<128x128xbf16>
      %c0_16 = arith.constant 0 : index
      %c0_17 = arith.constant 0 : index
      %c0_18 = arith.constant 0 : index
      %23 = vector.load %arg5[%c0_16, %c0_17, %c0_18] : memref<1x128x128xbf16, #tpu.memory_space<vmem>>, vector<1x128x128xbf16>
      %24 = vector.shape_cast %23 : vector<1x128x128xbf16> to vector<128x128xbf16>
      %25 = vector.shape_cast %22 : vector<128x128xbf16> to vector<1x128x128xbf16>
      tpu.vector_store %arg5[%c0_16, %c0_17, %c0_18], %25 {strides = array<i32>} : memref<1x128x128xbf16, #tpu.memory_space<vmem>>, vector<1x128x128xbf16>,
      %cst_19 = arith.constant dense<0.000000e+00> : vector<128xf32>
      %26 = vector.multi_reduction <add>, %21, %cst_19 [0] : vector<128x128xf32> to vector<128xf32>
      %27 = vector.shape_cast %26 : vector<128xf32> to vector<1x128xf32>
      %28 = arith.mulf %21, %21 : vector<128x128xf32>
      %cst_20 = arith.constant dense<0.000000e+00> : vector<128xf32>
      %29 = vector.multi_reduction <add>, %28, %cst_20 [0] : vector<128x128xf32> to vector<128xf32>
      %30 = vector.shape_cast %29 : vector<128xf32> to vector<1x128xf32>
      %cst_21 = arith.constant 0.000000e+00 : f32
      %31 = vector.broadcast %cst_21 : f32 to vector<6x128xf32>
      %32 = tpu.concatenate %27, %30, %31 in 0 : vector<1x128xf32>, vector<1x128xf32>, vector<6x128xf32> -> vector<8x128xf32>
      %c0_22 = arith.constant 0 : index
      %c0_23 = arith.constant 0 : index
      %c0_24 = arith.constant 0 : index
      %c0_25 = arith.constant 0 : index
      %33 = vector.load %arg6[%c0_22, %c0_23, %c0_24, %c0_25] : memref<1x1x8x128xf32, #tpu.memory_space<vmem>>, vector<1x1x8x128xf32>
      %34 = vector.shape_cast %33 : vector<1x1x8x128xf32> to vector<8x128xf32>
      %35 = vector.shape_cast %32 : vector<8x128xf32> to vector<1x1x8x128xf32>
      tpu.vector_store %arg6[%c0_22, %c0_23, %c0_24, %c0_25], %35 {strides = array<i32>} : memref<1x1x8x128xf32, #tpu.memory_space<vmem>>, vector<1x1x8x128xf32>,
    } else {
    }
    return
  }
  func.func @transform_0(%arg0: i32, %arg1: i32, %arg2: i32) -> (i32, i32, i32) {
    %c0_i32 = arith.constant 0 : i32
    return %arg0, %arg1, %arg2 : i32, i32, i32
  }
  func.func @transform_1(%arg0: i32, %arg1: i32, %arg2: i32) -> (i32, i32, i32) {
    %c0_i32 = arith.constant 0 : i32
    %c0_i32_0 = arith.constant 0 : i32
    return %arg0, %arg2, %c0_i32 : i32, i32, i32
  }
  func.func @transform_2(%arg0: i32, %arg1: i32, %arg2: i32) -> (i32, i32, i32) {
    %c0_i32 = arith.constant 0 : i32
    %c0_i32_0 = arith.constant 0 : i32
    return %arg0, %arg1, %c0_i32 : i32, i32, i32
  }
  func.func @transform_3(%arg0: i32, %arg1: i32, %arg2: i32) -> (i32, i32, i32, i32) {
    %c0_i32 = arith.constant 0 : i32
    %c0_i32_0 = arith.constant 0 : i32
    %c0_i32_1 = arith.constant 0 : i32
    return %arg0, %arg1, %c0_i32, %c0_i32_0 : i32, i32, i32, i32
  }
}

module attributes {stable_mosaic.version = 11 : i64} {
  func.func @_gemm_act_stats_kernel(%arg0: i32, %arg1: i32, %arg2: i32, %arg3: memref<1x128x128xbf16, #tpu.memory_space<vmem>>, %arg4: memref<1x128x128xbf16, #tpu.memory_space<vmem>>, %arg5: memref<1x128x128xbf16, #tpu.memory_space<vmem>>, %arg6: memref<1x1x8x128xf32, #tpu.memory_space<vmem>>, %arg7: memref<128x128xf32, #tpu.memory_space<vmem>>) attributes {dimension_semantics = [#tpu.dimension_semantics<parallel>, #tpu.dimension_semantics<parallel>, #tpu.dimension_semantics<arbitrary>], iteration_bounds = array<i64: 4, 1, 1>, scalar_prefetch = 0 : i64, scratch_operands = 1 : i64, tpu.core_type = #tpu.core_type<tc>, window_params = [{transform_indices = @transform_0, window_bounds = array<i64: 1, 128, 128>}, {transform_indices = @transform_1, window_bounds = array<i64: 1, 128, 128>}, {transform_indices = @transform_2, window_bounds = array<i64: 1, 128, 128>}, {transform_indices = @transform_3, window_bounds = array<i64: 1, 1, 8, 128>}]} {
    %c0_i32 = arith.constant 0 : i32
    %0 = arith.cmpi eq, %arg2, %c0_i32 : i32
    %1 = arith.extui %0 : i1 to i32
    %c0_i32_0 = arith.constant 0 : i32
    %2 = arith.cmpi ne, %1, %c0_i32_0 : i32
    scf.if %2 {
      %cst_14 = arith.constant 0.000000e+00 : f32
      %21 = vector.broadcast %cst_14 : f32 to vector<128x128xf32>
      %c0_15 = arith.constant 0 : index
      %c0_16 = arith.constant 0 : index
      %22 = vector.load %arg7[%c0_15, %c0_16] : memref<128x128xf32, #tpu.memory_space<vmem>>, vector<128x128xf32>
      tpu.vector_store %arg7[%c0_15, %c0_16], %21 {strides = array<i32>} : memref<128x128xf32, #tpu.memory_space<vmem>>, vector<128x128xf32>,
    } else {
    }
    %c0 = arith.constant 0 : index
    %c0_1 = arith.constant 0 : index
    %c0_2 = arith.constant 0 : index
    %3 = vector.load %arg3[%c0, %c0_1, %c0_2] : memref<1x128x128xbf16, #tpu.memory_space<vmem>>, vector<1x128x128xbf16>
    %4 = vector.shape_cast %3 : vector<1x128x128xbf16> to vector<128x128xbf16>
    %5 = arith.extf %4 : vector<128x128xbf16> to vector<128x128xf32>
    %cst = arith.constant 0.000000e+00 : f32
    %6 = vector.broadcast %cst : f32 to vector<128x128xf32>
    %7 = arith.cmpf oge, %5, %6 : vector<128x128xf32>
    %cst_3 = arith.constant 0.000000e+00 : f32
    %8 = vector.broadcast %cst_3 : f32 to vector<128x128xf32>
    %9 = arith.mulf %8, %5 : vector<128x128xf32>
    %10 = arith.select %7, %5, %9 : vector<128x128xi1>, vector<128x128xf32>
    %c0_4 = arith.constant 0 : index
    %c0_5 = arith.constant 0 : index
    %11 = vector.load %arg7[%c0_4, %c0_5] : memref<128x128xf32, #tpu.memory_space<vmem>>, vector<128x128xf32>
    %12 = arith.truncf %10 : vector<128x128xf32> to vector<128x128xbf16>
    %c0_6 = arith.constant 0 : index
    %c0_7 = arith.constant 0 : index
    %c0_8 = arith.constant 0 : index
    %13 = vector.load %arg4[%c0_6, %c0_7, %c0_8] : memref<1x128x128xbf16, #tpu.memory_space<vmem>>, vector<1x128x128xbf16>
    %14 = vector.shape_cast %13 : vector<1x128x128xbf16> to vector<128x128xbf16>
    %cst_9 = arith.constant dense<0.000000e+00> : vector<128x128xf32>
    %15 = tpu.matmul %12, %14, %cst_9 {dimension_numbers = #tpu.dot_dimension_numbers<[1], [0], [0], [1], [0, 0, 1, 1], [], []>} : vector<128x128xbf16>, vector<128x128xbf16>, vector<128x128xf32> -> vector<128x128xf32>
    %16 = arith.addf %11, %15 : vector<128x128xf32>
    %c0_10 = arith.constant 0 : index
    %c0_11 = arith.constant 0 : index
    %17 = vector.load %arg7[%c0_10, %c0_11] : memref<128x128xf32, #tpu.memory_space<vmem>>, vector<128x128xf32>
    tpu.vector_store %arg7[%c0_10, %c0_11], %16 {strides = array<i32>} : memref<128x128xf32, #tpu.memory_space<vmem>>, vector<128x128xf32>,
    %c0_i32_12 = arith.constant 0 : i32
    %18 = arith.cmpi eq, %arg2, %c0_i32_12 : i32
    %19 = arith.extui %18 : i1 to i32
    %c0_i32_13 = arith.constant 0 : i32
    %20 = arith.cmpi ne, %19, %c0_i32_13 : i32
    scf.if %20 {
      %c0_14 = arith.constant 0 : index
      %c0_15 = arith.constant 0 : index
      %21 = vector.load %arg7[%c0_14, %c0_15] : memref<128x128xf32, #tpu.memory_space<vmem>>, vector<128x128xf32>
      %22 = arith.truncf %21 : vector<128x128xf32> to vector<128x128xbf16>
      %c0_16 = arith.constant 0 : index
      %c0_17 = arith.constant 0 : index
      %c0_18 = arith.constant 0 : index
      %23 = vector.load %arg5[%c0_16, %c0_17, %c0_18] : memref<1x128x128xbf16, #tpu.memory_space<vmem>>, vector<1x128x128xbf16>
      %24 = vector.shape_cast %23 : vector<1x128x128xbf16> to vector<128x128xbf16>
      %25 = vector.shape_cast %22 : vector<128x128xbf16> to vector<1x128x128xbf16>
      tpu.vector_store %arg5[%c0_16, %c0_17, %c0_18], %25 {strides = array<i32>} : memref<1x128x128xbf16, #tpu.memory_space<vmem>>, vector<1x128x128xbf16>,
      %cst_19 = arith.constant dense<0.000000e+00> : vector<128xf32>
      %26 = vector.multi_reduction <add>, %21, %cst_19 [0] : vector<128x128xf32> to vector<128xf32>
      %27 = vector.shape_cast %26 : vector<128xf32> to vector<1x128xf32>
      %28 = arith.mulf %21, %21 : vector<128x128xf32>
      %cst_20 = arith.constant dense<0.000000e+00> : vector<128xf32>
      %29 = vector.multi_reduction <add>, %28, %cst_20 [0] : vector<128x128xf32> to vector<128xf32>
      %30 = vector.shape_cast %29 : vector<128xf32> to vector<1x128xf32>
      %cst_21 = arith.constant 0.000000e+00 : f32
      %31 = vector.broadcast %cst_21 : f32 to vector<6x128xf32>
      %32 = tpu.concatenate %27, %30, %31 in 0 : vector<1x128xf32>, vector<1x128xf32>, vector<6x128xf32> -> vector<8x128xf32>
      %c0_22 = arith.constant 0 : index
      %c0_23 = arith.constant 0 : index
      %c0_24 = arith.constant 0 : index
      %c0_25 = arith.constant 0 : index
      %33 = vector.load %arg6[%c0_22, %c0_23, %c0_24, %c0_25] : memref<1x1x8x128xf32, #tpu.memory_space<vmem>>, vector<1x1x8x128xf32>
      %34 = vector.shape_cast %33 : vector<1x1x8x128xf32> to vector<8x128xf32>
      %35 = vector.shape_cast %32 : vector<8x128xf32> to vector<1x1x8x128xf32>
      tpu.vector_store %arg6[%c0_22, %c0_23, %c0_24, %c0_25], %35 {strides = array<i32>} : memref<1x1x8x128xf32, #tpu.memory_space<vmem>>, vector<1x1x8x128xf32>,
    } else {
    }
    return
  }
  func.func @transform_0(%arg0: i32, %arg1: i32, %arg2: i32) -> (i32, i32, i32) {
    %c0_i32 = arith.constant 0 : i32
    return %arg0, %arg1, %arg2 : i32, i32, i32
  }
  func.func @transform_1(%arg0: i32, %arg1: i32, %arg2: i32) -> (i32, i32, i32) {
    %c0_i32 = arith.constant 0 : i32
    %c0_i32_0 = arith.constant 0 : i32
    return %arg0, %arg2, %c0_i32 : i32, i32, i32
  }
  func.func @transform_2(%arg0: i32, %arg1: i32, %arg2: i32) -> (i32, i32, i32) {
    %c0_i32 = arith.constant 0 : i32
    %c0_i32_0 = arith.constant 0 : i32
    return %arg0, %arg1, %c0_i32 : i32, i32, i32
  }
  func.func @transform_3(%arg0: i32, %arg1: i32, %arg2: i32) -> (i32, i32, i32, i32) {
    %c0_i32 = arith.constant 0 : i32
    %c0_i32_0 = arith.constant 0 : i32
    %c0_i32_1 = arith.constant 0 : i32
    return %arg0, %arg1, %c0_i32, %c0_i32_0 : i32, i32, i32, i32
  }
}

module attributes {stable_mosaic.version = 11 : i64} {
  func.func @_scale_bias_kernel(%arg0: i32, %arg1: memref<512x128xbf16, #tpu.memory_space<vmem>>, %arg2: memref<1x128xf32, #tpu.memory_space<vmem>>, %arg3: memref<1x128xf32, #tpu.memory_space<vmem>>, %arg4: memref<512x128xf32, #tpu.memory_space<vmem>>) attributes {dimension_semantics = [#tpu.dimension_semantics<parallel>], iteration_bounds = array<i64: 1>, scalar_prefetch = 0 : i64, scratch_operands = 0 : i64, tpu.core_type = #tpu.core_type<tc>, window_params = [{transform_indices = @transform_0, window_bounds = array<i64: 512, 128>}, {pipeline_mode = #tpu.pipeline_mode<synchronous>, transform_indices = @transform_1, window_bounds = array<i64: 1, 128>}, {pipeline_mode = #tpu.pipeline_mode<synchronous>, transform_indices = @transform_2, window_bounds = array<i64: 1, 128>}, {transform_indices = @transform_3, window_bounds = array<i64: 512, 128>}]} {
    %c0 = arith.constant 0 : index
    %c0_0 = arith.constant 0 : index
    %0 = vector.load %arg1[%c0, %c0_0] : memref<512x128xbf16, #tpu.memory_space<vmem>>, vector<512x128xbf16>
    %1 = arith.extf %0 : vector<512x128xbf16> to vector<512x128xf32>
    %c0_1 = arith.constant 0 : index
    %c0_2 = arith.constant 0 : index
    %2 = vector.load %arg2[%c0_1, %c0_2] : memref<1x128xf32, #tpu.memory_space<vmem>>, vector<1x128xf32>
    %3 = vector.broadcast %2 : vector<1x128xf32> to vector<512x128xf32>
    %4 = arith.mulf %1, %3 : vector<512x128xf32>
    %c0_3 = arith.constant 0 : index
    %c0_4 = arith.constant 0 : index
    %5 = vector.load %arg3[%c0_3, %c0_4] : memref<1x128xf32, #tpu.memory_space<vmem>>, vector<1x128xf32>
    %6 = vector.broadcast %5 : vector<1x128xf32> to vector<512x128xf32>
    %7 = arith.addf %4, %6 : vector<512x128xf32>
    %c0_5 = arith.constant 0 : index
    %c0_6 = arith.constant 0 : index
    %8 = vector.load %arg4[%c0_5, %c0_6] : memref<512x128xf32, #tpu.memory_space<vmem>>, vector<512x128xf32>
    tpu.vector_store %arg4[%c0_5, %c0_6], %7 {strides = array<i32>} : memref<512x128xf32, #tpu.memory_space<vmem>>, vector<512x128xf32>,
    return
  }
  func.func @transform_0(%arg0: i32) -> (i32, i32) {
    %c0_i32 = arith.constant 0 : i32
    %c0_i32_0 = arith.constant 0 : i32
    return %arg0, %c0_i32 : i32, i32
  }
  func.func @transform_1(%arg0: i32) -> (i32, i32) {
    %c0_i32 = arith.constant 0 : i32
    %c0_i32_0 = arith.constant 0 : i32
    %c0_i32_1 = arith.constant 0 : i32
    return %c0_i32, %c0_i32_0 : i32, i32
  }
  func.func @transform_2(%arg0: i32) -> (i32, i32) {
    %c0_i32 = arith.constant 0 : i32
    %c0_i32_0 = arith.constant 0 : i32
    %c0_i32_1 = arith.constant 0 : i32
    return %c0_i32, %c0_i32_0 : i32, i32
  }
  func.func @transform_3(%arg0: i32) -> (i32, i32) {
    %c0_i32 = arith.constant 0 : i32
    %c0_i32_0 = arith.constant 0 : i32
    return %arg0, %c0_i32 : i32, i32
  }
}

</mosaic_0001>

<llo_original>
// kernel: unet_skip_conn_block.5
$region0: #{unet_skip_conn_block.5}
  #allocation0 [shape = 'u32[]', space=smem, size = 0x4, offset = 0x4, fixed_abs, tag = 'smem constant byte address 0x4 - core index']
  #allocation1 [shape = 'u32[144,128]{1,0:T(1,128)}', space=vmem, size = 0x12000, scoped, tag = 'internal scratch']
  %s0 = inlined_call_operand.vmem [shape: bf16[128,128], index: 0, kind: input, shape index: {}]
  %s1 = inlined_call_operand.vmem [shape: f32[1,128], index: 1, kind: input, shape index: {}]
  %s2 = inlined_call_operand.vmem [shape: f32[1,128], index: 2, kind: input, shape index: {}]
  %s3 = inlined_call_operand.vmem [shape: f32[128,128], index: 3, kind: output, shape index: {}]
  %s4 = sld [smem:[#allocation0]]
  $region22: #{unet_skip_conn_block.5} parent=0
    _
  %s6 = ssub.s32 1, %s4
  %s7 = scalar_select 0, %s6, %s4
  // Predicated region
  $region2: #{unet_skip_conn_block.5} parent=0 // pred_check
    _
  $region3: #{unet_skip_conn_block.5} parent=0 // pred_check_branch
    %9 = sbr.rel (0) target = $region5
  $region4: #{unet_skip_conn_block.5} parent=0 // pred_region
    _
  $region5: #{unet_skip_conn_block.5} parent=0 // pred_fallthru
    _
  // Predicated region
  $region6: #{unet_skip_conn_block.5} parent=0 // pred_check
    _
  $region7: #{unet_skip_conn_block.5} parent=0 // pred_check_branch
    %11 = sbr.rel (0) target = $region9
  $region8: #{unet_skip_conn_block.5} parent=0 // pred_region
    _
  $region9: #{unet_skip_conn_block.5} parent=0 // pred_fallthru
    _
  // Predicated region
  $region10: #{unet_skip_conn_block.5} parent=0 // pred_check
    _
  $region11: #{unet_skip_conn_block.5} parent=0 // pred_check_branch
    %13 = sbr.rel (0) target = $region13
  $region12: #{unet_skip_conn_block.5} parent=0 // pred_region
    _
  $region13: #{unet_skip_conn_block.5} parent=0 // pred_fallthru
    _
  %v14 = vld [vmem:[%s0] sm:$0xf]
  %v15 = vld [vmem:[%s0 + $0x4] sm:$0xf]
  %v16 = vld [vmem:[%s0 + $0x8] sm:$0xf]
  %v17 = vld [vmem:[%s0 + $0xc] sm:$0xf]
  %v18 = vld [vmem:[%s0 + $0x10] sm:$0xf]
  %v19 = vld [vmem:[%s0 + $0x14] sm:$0xf]
  %v20 = vld [vmem:[%s0 + $0x18] sm:$0xf]
  %v21 = vld [vmem:[%s0 + $0x1c] sm:$0xf]
  %v22 = vld [vmem:[%s0 + $0x20] sm:$0xf]
  %v23 = vld [vmem:[%s0 + $0x24] sm:$0xf]
  %v24 = vld [vmem:[%s0 + $0x28] sm:$0xf]
  %v25 = vld [vmem:[%s0 + $0x2c] sm:$0xf]
  %v26 = vld [vmem:[%s0 + $0x30] sm:$0xf]
  %v27 = vld [vmem:[%s0 + $0x34] sm:$0xf]
  %v28 = vld [vmem:[%s0 + $0x38] sm:$0xf]
  %v29 = vld [vmem:[%s0 + $0x3c] sm:$0xf]
  %v30 = vunpack.c.l.bf16 %v14
  %v31 = vunpack.c.l.bf16 %v15
  %v32 = vunpack.c.l.bf16 %v16
  %v33 = vunpack.c.l.bf16 %v17
  %v34 = vunpack.c.l.bf16 %v18
  %v35 = vunpack.c.l.bf16 %v19
  %v36 = vunpack.c.l.bf16 %v20
  %v37 = vunpack.c.l.bf16 %v21
  %v38 = vunpack.c.l.bf16 %v22
  %v39 = vunpack.c.l.bf16 %v23
  %v40 = vunpack.c.l.bf16 %v24
  %v41 = vunpack.c.l.bf16 %v25
  %v42 = vunpack.c.l.bf16 %v26
  %v43 = vunpack.c.l.bf16 %v27
  %v44 = vunpack.c.l.bf16 %v28
  %v45 = vunpack.c.l.bf16 %v29
  %v46 = vld [vmem:[%s1] sm:$0x1]
  %v48 = vlaneseq
  %v49 = vshrl.u32 %v48, 7
  %v50 = vsub.s32 0, %v49
  %v51 = vrot.slane %v46, %v50
  %v53 = vmul.f32 %v30, %v51
  %v54 = vmul.f32 %v31, %v51
  %v55 = vmul.f32 %v32, %v51
  %v56 = vmul.f32 %v33, %v51
  %v57 = vmul.f32 %v34, %v51
  %v58 = vmul.f32 %v35, %v51
  %v59 = vmul.f32 %v36, %v51
  %v60 = vmul.f32 %v37, %v51
  %v61 = vmul.f32 %v38, %v51
  %v62 = vmul.f32 %v39, %v51
  %v63 = vmul.f32 %v40, %v51
  %v64 = vmul.f32 %v41, %v51
  %v65 = vmul.f32 %v42, %v51
  %v66 = vmul.f32 %v43, %v51
  %v67 = vmul.f32 %v44, %v51
  %v68 = vmul.f32 %v45, %v51
  %v69 = vld [vmem:[%s2] sm:$0x1]
  %v71 = vlaneseq
  %v72 = vshrl.u32 %v71, 7
  %v73 = vsub.s32 0, %v72
  %v74 = vrot.slane %v69, %v73
  %v76 = vadd.f32 %v53, %v74
  %v77 = vadd.f32 %v54, %v74
  %v78 = vadd.f32 %v55, %v74
  %v79 = vadd.f32 %v56, %v74
  %v80 = vadd.f32 %v57, %v74
  %v81 = vadd.f32 %v58, %v74
  %v82 = vadd.f32 %v59, %v74
  %v83 = vadd.f32 %v60, %v74
  %v84 = vadd.f32 %v61, %v74
  %v85 = vadd.f32 %v62, %v74
  %v86 = vadd.f32 %v63, %v74
  %v87 = vadd.f32 %v64, %v74
  %v88 = vadd.f32 %v65, %v74
  %v89 = vadd.f32 %v66, %v74
  %v90 = vadd.f32 %v67, %v74
  %v91 = vadd.f32 %v68, %v74
  %92 = vst [vmem:[%s3] sm:$0xff] %v76
  %93 = vst [vmem:[%s3 + $0x8] sm:$0xff] %v77
  %94 = vst [vmem:[%s3 + $0x10] sm:$0xff] %v78
  %95 = vst [vmem:[%s3 + $0x18] sm:$0xff] %v79
  %96 = vst [vmem:[%s3 + $0x20] sm:$0xff] %v80
  %97 = vst [vmem:[%s3 + $0x28] sm:$0xff] %v81
  %98 = vst [vmem:[%s3 + $0x30] sm:$0xff] %v82
  %99 = vst [vmem:[%s3 + $0x38] sm:$0xff] %v83
  %100 = vst [vmem:[%s3 + $0x40] sm:$0xff] %v84
  %101 = vst [vmem:[%s3 + $0x48] sm:$0xff] %v85
  %102 = vst [vmem:[%s3 + $0x50] sm:$0xff] %v86
  %103 = vst [vmem:[%s3 + $0x58] sm:$0xff] %v87
  %104 = vst [vmem:[%s3 + $0x60] sm:$0xff] %v88
  %105 = vst [vmem:[%s3 + $0x68] sm:$0xff] %v89
  %106 = vst [vmem:[%s3 + $0x70] sm:$0xff] %v90
  %107 = vst [vmem:[%s3 + $0x78] sm:$0xff] %v91
  // Predicated region
  $region14: #{unet_skip_conn_block.5} parent=0 // pred_check
    _
  $region15: #{unet_skip_conn_block.5} parent=0 // pred_check_branch
    %109 = sbr.rel (0) target = $region17
  $region16: #{unet_skip_conn_block.5} parent=0 // pred_region
    _
  $region17: #{unet_skip_conn_block.5} parent=0 // pred_fallthru
    _
  // Predicated region
  $region18: #{unet_skip_conn_block.5} parent=0 // pred_check
    _
  $region19: #{unet_skip_conn_block.5} parent=0 // pred_check_branch
    %111 = sbr.rel (0) target = $region21
  $region20: #{unet_skip_conn_block.5} parent=0 // pred_region
    _
  $region21: #{unet_skip_conn_block.5} parent=0 // pred_fallthru
    _

// kernel: unet_skip_conn_block.4
$region0: #{unet_skip_conn_block.4}
  #allocation0 [shape = 'u32[]', space=smem, size = 0x4, offset = 0x4, fixed_abs, tag = 'smem constant byte address 0x4 - core index']
  #allocation1 [shape = 'u32[144,128]{1,0:T(1,128)}', space=vmem, size = 0x12000, scoped, tag = 'internal scratch']
  #allocation2 [shape = 'f32[128,128]{1,0:T(8,128)}', space=vmem, size = 0x10000, scoped, tag = 'scratch operand']
  %s0 = inlined_call_operand.vmem [shape: bf16[1,128,128], index: 0, kind: input, shape index: {}]
  %s1 = inlined_call_operand.vmem [shape: bf16[1,128,128], index: 1, kind: input, shape index: {}]
  %s2 = inlined_call_operand.vmem [shape: bf16[1,128,128], index: 2, kind: output, shape index: {0}]
  %s3 = inlined_call_operand.vmem [shape: f32[1,1,8,128], index: 3, kind: output, shape index: {1}]
  %4 = xla_tuple %s2, %s3
  %s5 = sld [smem:[#allocation0]]
  $region34: #{unet_skip_conn_block.4} parent=0
    _
  %s7 = ssub.s32 1, %s5
  %s8 = scalar_select 0, %s7, %s5
  // Predicated region
  $region2: #{unet_skip_conn_block.4} parent=0 // pred_check
    _
  $region3: #{unet_skip_conn_block.4} parent=0 // pred_check_branch
    %10 = sbr.rel (0) target = $region5
  $region4: #{unet_skip_conn_block.4} parent=0 // pred_region
    _
  $region5: #{unet_skip_conn_block.4} parent=0 // pred_fallthru
    _
  // Predicated region
  $region6: #{unet_skip_conn_block.4} parent=0 // pred_check
    _
  $region7: #{unet_skip_conn_block.4} parent=0 // pred_check_branch
    %12 = sbr.rel (0) target = $region9
  $region8: #{unet_skip_conn_block.4} parent=0 // pred_region
    _
  $region9: #{unet_skip_conn_block.4} parent=0 // pred_fallthru
    _
  %p14 = scmp.eq.s32.totalorder 0, 0
  // Predicated region
  $region10: #{unet_skip_conn_block.4} parent=0 // pred_check
    %p15 = pneg %p14
  $region11: #{unet_skip_conn_block.4} parent=0 // pred_check_branch
    %17 = sbr.rel (%p15) target = $region13
  $region12: #{unet_skip_conn_block.4} parent=0 // pred_region
    %18 = vst [vmem:[#allocation2] sm:$0xff] 0.0
    %19 = vst [vmem:[#allocation2 + $0x8] sm:$0xff] 0.0
    %20 = vst [vmem:[#allocation2 + $0x10] sm:$0xff] 0.0
    %21 = vst [vmem:[#allocation2 + $0x18] sm:$0xff] 0.0
    %22 = vst [vmem:[#allocation2 + $0x20] sm:$0xff] 0.0
    %23 = vst [vmem:[#allocation2 + $0x28] sm:$0xff] 0.0
    %24 = vst [vmem:[#allocation2 + $0x30] sm:$0xff] 0.0
    %25 = vst [vmem:[#allocation2 + $0x38] sm:$0xff] 0.0
    %26 = vst [vmem:[#allocation2 + $0x40] sm:$0xff] 0.0
    %27 = vst [vmem:[#allocation2 + $0x48] sm:$0xff] 0.0
    %28 = vst [vmem:[#allocation2 + $0x50] sm:$0xff] 0.0
    %29 = vst [vmem:[#allocation2 + $0x58] sm:$0xff] 0.0
    %30 = vst [vmem:[#allocation2 + $0x60] sm:$0xff] 0.0
    %31 = vst [vmem:[#allocation2 + $0x68] sm:$0xff] 0.0
    %32 = vst [vmem:[#allocation2 + $0x70] sm:$0xff] 0.0
    %33 = vst [vmem:[#allocation2 + $0x78] sm:$0xff] 0.0
  $region13: #{unet_skip_conn_block.4} parent=0 // pred_fallthru
    _
  %v34 = vld [vmem:[%s0] sm:$0xf]
  %v35 = vld [vmem:[%s0 + $0x4] sm:$0xf]
  %v36 = vld [vmem:[%s0 + $0x8] sm:$0xf]
  %v37 = vld [vmem:[%s0 + $0xc] sm:$0xf]
  %v38 = vld [vmem:[%s0 + $0x10] sm:$0xf]
  %v39 = vld [vmem:[%s0 + $0x14] sm:$0xf]
  %v40 = vld [vmem:[%s0 + $0x18] sm:$0xf]
  %v41 = vld [vmem:[%s0 + $0x1c] sm:$0xf]
  %v42 = vld [vmem:[%s0 + $0x20] sm:$0xf]
  %v43 = vld [vmem:[%s0 + $0x24] sm:$0xf]
  %v44 = vld [vmem:[%s0 + $0x28] sm:$0xf]
  %v45 = vld [vmem:[%s0 + $0x2c] sm:$0xf]
  %v46 = vld [vmem:[%s0 + $0x30] sm:$0xf]
  %v47 = vld [vmem:[%s0 + $0x34] sm:$0xf]
  %v48 = vld [vmem:[%s0 + $0x38] sm:$0xf]
  %v49 = vld [vmem:[%s0 + $0x3c] sm:$0xf]
  %v50 = vunpack.c.l.bf16 %v34
  %v51 = vunpack.c.l.bf16 %v35
  %v52 = vunpack.c.l.bf16 %v36
  %v53 = vunpack.c.l.bf16 %v37
  %v54 = vunpack.c.l.bf16 %v38
  %v55 = vunpack.c.l.bf16 %v39
  %v56 = vunpack.c.l.bf16 %v40
  %v57 = vunpack.c.l.bf16 %v41
  %v58 = vunpack.c.l.bf16 %v42
  %v59 = vunpack.c.l.bf16 %v43
  %v60 = vunpack.c.l.bf16 %v44
  %v61 = vunpack.c.l.bf16 %v45
  %v62 = vunpack.c.l.bf16 %v46
  %v63 = vunpack.c.l.bf16 %v47
  %v64 = vunpack.c.l.bf16 %v48
  %v65 = vunpack.c.l.bf16 %v49
  %vm66 = vcmp.ge.f32.partialorder %v50, 0.0
  %vm67 = vcmp.ge.f32.partialorder %v51, 0.0
  %vm68 = vcmp.ge.f32.partialorder %v52, 0.0
  %vm69 = vcmp.ge.f32.partialorder %v53, 0.0
  %vm70 = vcmp.ge.f32.partialorder %v54, 0.0
  %vm71 = vcmp.ge.f32.partialorder %v55, 0.0
  %vm72 = vcmp.ge.f32.partialorder %v56, 0.0
  %vm73 = vcmp.ge.f32.partialorder %v57, 0.0
  %vm74 = vcmp.ge.f32.partialorder %v58, 0.0
  %vm75 = vcmp.ge.f32.partialorder %v59, 0.0
  %vm76 = vcmp.ge.f32.partialorder %v60, 0.0
  %vm77 = vcmp.ge.f32.partialorder %v61, 0.0
  %vm78 = vcmp.ge.f32.partialorder %v62, 0.0
  %vm79 = vcmp.ge.f32.partialorder %v63, 0.0
  %vm80 = vcmp.ge.f32.partialorder %v64, 0.0
  %vm81 = vcmp.ge.f32.partialorder %v65, 0.0
  %v82 = vmul.f32 %v50, 0.2
  %v83 = vmul.f32 %v51, 0.2
  %v84 = vmul.f32 %v52, 0.2
  %v85 = vmul.f32 %v53, 0.2
  %v86 = vmul.f32 %v54, 0.2
  %v87 = vmul.f32 %v55, 0.2
  %v88 = vmul.f32 %v56, 0.2
  %v89 = vmul.f32 %v57, 0.2
  %v90 = vmul.f32 %v58, 0.2
  %v91 = vmul.f32 %v59, 0.2
  %v92 = vmul.f32 %v60, 0.2
  %v93 = vmul.f32 %v61, 0.2
  %v94 = vmul.f32 %v62, 0.2
  %v95 = vmul.f32 %v63, 0.2
  %v96 = vmul.f32 %v64, 0.2
  %v97 = vmul.f32 %v65, 0.2
  %v98 = vsel %vm66, %v50, %v82
  %v99 = vsel %vm67, %v51, %v83
  %v100 = vsel %vm68, %v52, %v84
  %v101 = vsel %vm69, %v53, %v85
  %v102 = vsel %vm70, %v54, %v86
  %v103 = vsel %vm71, %v55, %v87
  %v104 = vsel %vm72, %v56, %v88
  %v105 = vsel %vm73, %v57, %v89
  %v106 = vsel %vm74, %v58, %v90
  %v107 = vsel %vm75, %v59, %v91
  %v108 = vsel %vm76, %v60, %v92
  %v109 = vsel %vm77, %v61, %v93
  %v110 = vsel %vm78, %v62, %v94
  %v111 = vsel %vm79, %v63, %v95
  %v112 = vsel %vm80, %v64, %v96
  %v113 = vsel %vm81, %v65, %v97
  %v114 = vld [vmem:[#allocation2] sm:$0xff]
  %v115 = vld [vmem:[#allocation2 + $0x8] sm:$0xff]
  %v116 = vld [vmem:[#allocation2 + $0x10] sm:$0xff]
  %v117 = vld [vmem:[#allocation2 + $0x18] sm:$0xff]
  %v118 = vld [vmem:[#allocation2 + $0x20] sm:$0xff]
  %v119 = vld [vmem:[#allocation2 + $0x28] sm:$0xff]
  %v120 = vld [vmem:[#allocation2 + $0x30] sm:$0xff]
  %v121 = vld [vmem:[#allocation2 + $0x38] sm:$0xff]
  %v122 = vld [vmem:[#allocation2 + $0x40] sm:$0xff]
  %v123 = vld [vmem:[#allocation2 + $0x48] sm:$0xff]
  %v124 = vld [vmem:[#allocation2 + $0x50] sm:$0xff]
  %v125 = vld [vmem:[#allocation2 + $0x58] sm:$0xff]
  %v126 = vld [vmem:[#allocation2 + $0x60] sm:$0xff]
  %v127 = vld [vmem:[#allocation2 + $0x68] sm:$0xff]
  %v128 = vld [vmem:[#allocation2 + $0x70] sm:$0xff]
  %v129 = vld [vmem:[#allocation2 + $0x78] sm:$0xff]
  %v130 = vpack.c.bf16 %v99, %v98
  %v131 = vpack.c.bf16 %v101, %v100
  %v132 = vpack.c.bf16 %v103, %v102
  %v133 = vpack.c.bf16 %v105, %v104
  %v134 = vpack.c.bf16 %v107, %v106
  %v135 = vpack.c.bf16 %v109, %v108
  %v136 = vpack.c.bf16 %v111, %v110
  %v137 = vpack.c.bf16 %v113, %v112
  %v138 = vld [vmem:[%s1] sm:$0xf]
  %v139 = vld [vmem:[%s1 + $0x4] sm:$0xf]
  %v140 = vld [vmem:[%s1 + $0x8] sm:$0xf]
  %v141 = vld [vmem:[%s1 + $0xc] sm:$0xf]
  %v142 = vld [vmem:[%s1 + $0x10] sm:$0xf]
  %v143 = vld [vmem:[%s1 + $0x14] sm:$0xf]
  %v144 = vld [vmem:[%s1 + $0x18] sm:$0xf]
  %v145 = vld [vmem:[%s1 + $0x1c] sm:$0xf]
  %v146 = vld [vmem:[%s1 + $0x20] sm:$0xf]
  %v147 = vld [vmem:[%s1 + $0x24] sm:$0xf]
  %v148 = vld [vmem:[%s1 + $0x28] sm:$0xf]
  %v149 = vld [vmem:[%s1 + $0x2c] sm:$0xf]
  %v150 = vld [vmem:[%s1 + $0x30] sm:$0xf]
  %v151 = vld [vmem:[%s1 + $0x34] sm:$0xf]
  %v152 = vld [vmem:[%s1 + $0x38] sm:$0xf]
  %v153 = vld [vmem:[%s1 + $0x3c] sm:$0xf]
  %v170 = vunpack.c.l.b16 %v138
  %v171 = vunpack.c.l.b16 %v139
  %v172 = vunpack.c.l.b16 %v140
  %v173 = vunpack.c.l.b16 %v141
  %v174 = vunpack.c.l.b16 %v142
  %v175 = vunpack.c.l.b16 %v143
  %v176 = vunpack.c.l.b16 %v144
  %v177 = vunpack.c.l.b16 %v145
  %v178 = vunpack.c.l.b16 %v146
  %v179 = vunpack.c.l.b16 %v147
  %v180 = vunpack.c.l.b16 %v148
  %v181 = vunpack.c.l.b16 %v149
  %v182 = vunpack.c.l.b16 %v150
  %v183 = vunpack.c.l.b16 %v151
  %v184 = vunpack.c.l.b16 %v152
  %v185 = vunpack.c.l.b16 %v153
  %v186 = vpack.c.b16 %v171, %v170
  %v187 = vpack.c.b16 %v173, %v172
  %v188 = vpack.c.b16 %v175, %v174
  %v189 = vpack.c.b16 %v177, %v176
  %v190 = vpack.c.b16 %v179, %v178
  %v191 = vpack.c.b16 %v181, %v180
  %v192 = vpack.c.b16 %v183, %v182
  %v193 = vpack.c.b16 %v185, %v184
  %202 = vmatprep.subr.bf16.mxu0 0
  %203 = vmatpush1.bf16.msra.mxu0 %v186
  %204 = vmatprep.subr.bf16.mxu0 0
  %205 = vmatpush1.bf16.msra.mxu0 %v187
  %206 = vmatprep.subr.bf16.mxu0 0
  %207 = vmatpush1.bf16.msra.mxu0 %v188
  %208 = vmatprep.subr.bf16.mxu0 0
  %209 = vmatpush1.bf16.msra.mxu0 %v189
  %210 = vmatprep.subr.bf16.mxu0 0
  %211 = vmatpush1.bf16.msra.mxu0 %v190
  %212 = vmatprep.subr.bf16.mxu0 0
  %213 = vmatpush1.bf16.msra.mxu0 %v191
  %214 = vmatprep.subr.bf16.mxu0 0
  %215 = vmatpush1.bf16.msra.mxu0 %v192
  %216 = vmatprep.subr.bf16.mxu0 0
  %217 = vmatpush1.bf16.msra.mxu0 %v193
  %218 = vmatprep.subr.bf16.mxu0 0
  %219 = vmatpush1.bf16.msra.mxu0 0
  %220 = vmatprep.subr.bf16.mxu0 0
  %221 = vmatpush1.bf16.msra.mxu0 0
  %222 = vmatprep.subr.bf16.mxu0 0
  %223 = vmatpush1.bf16.msra.mxu0 0
  %224 = vmatprep.subr.bf16.mxu0 0
  %225 = vmatpush1.bf16.msra.mxu0 0
  %226 = vmatprep.subr.bf16.mxu0 0
  %227 = vmatpush1.bf16.msra.mxu0 0
  %228 = vmatprep.subr.bf16.mxu0 0
  %229 = vmatpush1.bf16.msra.mxu0 0
  %230 = vmatprep.subr.bf16.mxu0 0
  %231 = vmatpush1.bf16.msra.mxu0 0
  %232 = vmatprep.subr.bf16.mxu0 0
  %233 = vmatpush1.bf16.msra.mxu0 0
  %234 = vmatprep.mubr.bf16.mxu0 0
  %235 = vmatmul.mubr.bf16.gmra.mrb[0].mxu0 %v130
  %v236 = vpop.f32.mrb[0].mxu0
  %v237 = vadd.f32 0.0, %v236
  %v238 = vpop.f32.mrb[0].mxu0
  %v239 = vpop.f32.mrb[0].mxu0
  %v240 = vadd.f32 0.0, %v239
  %v241 = vpop.f32.mrb[0].mxu0
  %242 = vmatprep.mubr.bf16.mxu0 0
  %243 = vmatmul.mubr.bf16.gmra.mrb[0].mxu0 %v131
  %v244 = vpop.f32.mrb[0].mxu0
  %v245 = vadd.f32 0.0, %v244
  %v246 = vpop.f32.mrb[0].mxu0
  %v247 = vpop.f32.mrb[0].mxu0
  %v248 = vadd.f32 0.0, %v247
  %v249 = vpop.f32.mrb[0].mxu0
  %250 = vmatprep.mubr.bf16.mxu0 0
  %251 = vmatmul.mubr.bf16.gmra.mrb[0].mxu0 %v132
  %v252 = vpop.f32.mrb[0].mxu0
  %v253 = vadd.f32 0.0, %v252
  %v254 = vpop.f32.mrb[0].mxu0
  %v255 = vpop.f32.mrb[0].mxu0
  %v256 = vadd.f32 0.0, %v255
  %v257 = vpop.f32.mrb[0].mxu0
  %258 = vmatprep.mubr.bf16.mxu0 0
  %259 = vmatmul.mubr.bf16.gmra.mrb[0].mxu0 %v133
  %v260 = vpop.f32.mrb[0].mxu0
  %v261 = vadd.f32 0.0, %v260
  %v262 = vpop.f32.mrb[0].mxu0
  %v263 = vpop.f32.mrb[0].mxu0
  %v264 = vadd.f32 0.0, %v263
  %v265 = vpop.f32.mrb[0].mxu0
  %266 = vmatprep.mubr.bf16.mxu0 0
  %267 = vmatmul.mubr.bf16.gmra.mrb[0].mxu0 %v134
  %v268 = vpop.f32.mrb[0].mxu0
  %v269 = vadd.f32 0.0, %v268
  %v270 = vpop.f32.mrb[0].mxu0
  %v271 = vpop.f32.mrb[0].mxu0
  %v272 = vadd.f32 0.0, %v271
  %v273 = vpop.f32.mrb[0].mxu0
  %274 = vmatprep.mubr.bf16.mxu0 0
  %275 = vmatmul.mubr.bf16.gmra.mrb[0].mxu0 %v135
  %v276 = vpop.f32.mrb[0].mxu0
  %v277 = vadd.f32 0.0, %v276
  %v278 = vpop.f32.mrb[0].mxu0
  %v279 = vpop.f32.mrb[0].mxu0
  %v280 = vadd.f32 0.0, %v279
  %v281 = vpop.f32.mrb[0].mxu0
  %282 = vmatprep.mubr.bf16.mxu0 0
  %283 = vmatmul.mubr.bf16.gmra.mrb[0].mxu0 %v136
  %v284 = vpop.f32.mrb[0].mxu0
  %v285 = vadd.f32 0.0, %v284
  %v286 = vpop.f32.mrb[0].mxu0
  %v287 = vpop.f32.mrb[0].mxu0
  %v288 = vadd.f32 0.0, %v287
  %v289 = vpop.f32.mrb[0].mxu0
  %290 = vmatprep.mubr.bf16.mxu0 0
  %291 = vmatmul.mubr.bf16.gmra.mrb[0].mxu0 %v137
  %v292 = vpop.f32.mrb[0].mxu0
  %v293 = vadd.f32 0.0, %v292
  %v294 = vpop.f32.mrb[0].mxu0
  %v295 = vpop.f32.mrb[0].mxu0
  %v296 = vadd.f32 0.0, %v295
  %v297 = vpop.f32.mrb[0].mxu0
  %298 = vdwg.mxu0
  %v299 = vadd.f32 %v114, %v237
  %v300 = vadd.f32 %v115, %v240
  %v301 = vadd.f32 %v116, %v245
  %v302 = vadd.f32 %v117, %v248
  %v303 = vadd.f32 %v118, %v253
  %v304 = vadd.f32 %v119, %v256
  %v305 = vadd.f32 %v120, %v261
  %v306 = vadd.f32 %v121, %v264
  %v307 = vadd.f32 %v122, %v269
  %v308 = vadd.f32 %v123, %v272
  %v309 = vadd.f32 %v124, %v277
  %v310 = vadd.f32 %v125, %v280
  %v311 = vadd.f32 %v126, %v285
  %v312 = vadd.f32 %v127, %v288
  %v313 = vadd.f32 %v128, %v293
  %v314 = vadd.f32 %v129, %v296
  %315 = vst [vmem:[#allocation2] sm:$0xff] %v299
  %316 = vst [vmem:[#allocation2 + $0x8] sm:$0xff] %v300
  %317 = vst [vmem:[#allocation2 + $0x10] sm:$0xff] %v301
  %318 = vst [vmem:[#allocation2 + $0x18] sm:$0xff] %v302
  %319 = vst [vmem:[#allocation2 + $0x20] sm:$0xff] %v303
  %320 = vst [vmem:[#allocation2 + $0x28] sm:$0xff] %v304
  %321 = vst [vmem:[#allocation2 + $0x30] sm:$0xff] %v305
  %322 = vst [vmem:[#allocation2 + $0x38] sm:$0xff] %v306
  %323 = vst [vmem:[#allocation2 + $0x40] sm:$0xff] %v307
  %324 = vst [vmem:[#allocation2 + $0x48] sm:$0xff] %v308
  %325 = vst [vmem:[#allocation2 + $0x50] sm:$0xff] %v309
  %326 = vst [vmem:[#allocation2 + $0x58] sm:$0xff] %v310
  %327 = vst [vmem:[#allocation2 + $0x60] sm:$0xff] %v311
  %328 = vst [vmem:[#allocation2 + $0x68] sm:$0xff] %v312
  %329 = vst [vmem:[#allocation2 + $0x70] sm:$0xff] %v313
  %330 = vst [vmem:[#allocation2 + $0x78] sm:$0xff] %v314
  // Predicated region
  $region14: #{unet_skip_conn_block.4} parent=0 // pred_check
    %p331 = pneg %p14
  $region15: #{unet_skip_conn_block.4} parent=0 // pred_check_branch
    %333 = sbr.rel (%p331) target = $region17
  $region16: #{unet_skip_conn_block.4} parent=0 // pred_region
    %v334 = vld [vmem:[#allocation2] sm:$0xff]
    %v335 = vld [vmem:[#allocation2 + $0x8] sm:$0xff]
    %v336 = vld [vmem:[#allocation2 + $0x10] sm:$0xff]
    %v337 = vld [vmem:[#allocation2 + $0x18] sm:$0xff]
    %v338 = vld [vmem:[#allocation2 + $0x20] sm:$0xff]
    %v339 = vld [vmem:[#allocation2 + $0x28] sm:$0xff]
    %v340 = vld [vmem:[#allocation2 + $0x30] sm:$0xff]
    %v341 = vld [vmem:[#allocation2 + $0x38] sm:$0xff]
    %v342 = vld [vmem:[#allocation2 + $0x40] sm:$0xff]
    %v343 = vld [vmem:[#allocation2 + $0x48] sm:$0xff]
    %v344 = vld [vmem:[#allocation2 + $0x50] sm:$0xff]
    %v345 = vld [vmem:[#allocation2 + $0x58] sm:$0xff]
    %v346 = vld [vmem:[#allocation2 + $0x60] sm:$0xff]
    %v347 = vld [vmem:[#allocation2 + $0x68] sm:$0xff]
    %v348 = vld [vmem:[#allocation2 + $0x70] sm:$0xff]
    %v349 = vld [vmem:[#allocation2 + $0x78] sm:$0xff]
    %v350 = vpack.c.bf16 %v335, %v334
    %v351 = vpack.c.bf16 %v337, %v336
    %v352 = vpack.c.bf16 %v339, %v338
    %v353 = vpack.c.bf16 %v341, %v340
    %v354 = vpack.c.bf16 %v343, %v342
    %v355 = vpack.c.bf16 %v345, %v344
    %v356 = vpack.c.bf16 %v347, %v346
    %v357 = vpack.c.bf16 %v349, %v348
    %v366 = vunpack.c.l.b16 %v350
    %v367 = vunpack.c.h.b16 %v350
    %v368 = vunpack.c.l.b16 %v351
    %v369 = vunpack.c.h.b16 %v351
    %v370 = vunpack.c.l.b16 %v352
    %v371 = vunpack.c.h.b16 %v352
    %v372 = vunpack.c.l.b16 %v353
    %v373 = vunpack.c.h.b16 %v353
    %v374 = vunpack.c.l.b16 %v354
    %v375 = vunpack.c.h.b16 %v354
    %v376 = vunpack.c.l.b16 %v355
    %v377 = vunpack.c.h.b16 %v355
    %v378 = vunpack.c.l.b16 %v356
    %v379 = vunpack.c.h.b16 %v356
    %v380 = vunpack.c.l.b16 %v357
    %v381 = vunpack.c.h.b16 %v357
    %v382 = vpack.c.b16 %v366, %v366
    %v383 = vpack.c.b16 %v367, %v367
    %v384 = vpack.c.b16 %v368, %v368
    %v385 = vpack.c.b16 %v369, %v369
    %v386 = vpack.c.b16 %v370, %v370
    %v387 = vpack.c.b16 %v371, %v371
    %v388 = vpack.c.b16 %v372, %v372
    %v389 = vpack.c.b16 %v373, %v373
    %v390 = vpack.c.b16 %v374, %v374
    %v391 = vpack.c.b16 %v375, %v375
    %v392 = vpack.c.b16 %v376, %v376
    %v393 = vpack.c.b16 %v377, %v377
    %v394 = vpack.c.b16 %v378, %v378
    %v395 = vpack.c.b16 %v379, %v379
    %v396 = vpack.c.b16 %v380, %v380
    %v397 = vpack.c.b16 %v381, %v381
    %414 = vst [vmem:[%s2] sm:$0xf] %v382
    %415 = vst [vmem:[%s2 + $0x4] sm:$0xf] %v383
    %416 = vst [vmem:[%s2 + $0x8] sm:$0xf] %v384
    %417 = vst [vmem:[%s2 + $0xc] sm:$0xf] %v385
    %418 = vst [vmem:[%s2 + $0x10] sm:$0xf] %v386
    %419 = vst [vmem:[%s2 + $0x14] sm:$0xf] %v387
    %420 = vst [vmem:[%s2 + $0x18] sm:$0xf] %v388
    %421 = vst [vmem:[%s2 + $0x1c] sm:$0xf] %v389
    %422 = vst [vmem:[%s2 + $0x20] sm:$0xf] %v390
    %423 = vst [vmem:[%s2 + $0x24] sm:$0xf] %v391
    %424 = vst [vmem:[%s2 + $0x28] sm:$0xf] %v392
    %425 = vst [vmem:[%s2 + $0x2c] sm:$0xf] %v393
    %426 = vst [vmem:[%s2 + $0x30] sm:$0xf] %v394
    %427 = vst [vmem:[%s2 + $0x34] sm:$0xf] %v395
    %428 = vst [vmem:[%s2 + $0x38] sm:$0xf] %v396
    %429 = vst [vmem:[%s2 + $0x3c] sm:$0xf] %v397
    %v430 = vadd.f32 %v334, %v335
    %v431 = vadd.f32 %v430, %v336
    %v432 = vadd.f32 %v431, %v337
    %v433 = vadd.f32 %v432, %v338
    %v434 = vadd.f32 %v433, %v339
    %v435 = vadd.f32 %v434, %v340
    %v436 = vadd.f32 %v435, %v341
    %v437 = vadd.f32 %v436, %v342
    %v438 = vadd.f32 %v437, %v343
    %v439 = vadd.f32 %v438, %v344
    %v440 = vadd.f32 %v439, %v345
    %v441 = vadd.f32 %v440, %v346
    %v442 = vadd.f32 %v441, %v347
    %v443 = vadd.f32 %v442, %v348
    %v444 = vadd.f32 %v443, %v349
    %v445 = vrot.slane %v444, 4
    %v446 = vadd.f32 %v444, %v445
    %v447 = vrot.slane %v446, 2
    %v448 = vadd.f32 %v446, %v447
    %v449 = vrot.slane %v448, 1
    %v450 = vadd.f32 %v448, %v449
    %v451 = vmul.f32 %v334, %v334
    %v452 = vmul.f32 %v335, %v335
    %v453 = vmul.f32 %v336, %v336
    %v454 = vmul.f32 %v337, %v337
    %v455 = vmul.f32 %v338, %v338
    %v456 = vmul.f32 %v339, %v339
    %v457 = vmul.f32 %v340, %v340
    %v458 = vmul.f32 %v341, %v341
    %v459 = vmul.f32 %v342, %v342
    %v460 = vmul.f32 %v343, %v343
    %v461 = vmul.f32 %v344, %v344
    %v462 = vmul.f32 %v345, %v345
    %v463 = vmul.f32 %v346, %v346
    %v464 = vmul.f32 %v347, %v347
    %v465 = vmul.f32 %v348, %v348
    %v466 = vmul.f32 %v349, %v349
    %v467 = vadd.f32 %v451, %v452
    %v468 = vadd.f32 %v467, %v453
    %v469 = vadd.f32 %v468, %v454
    %v470 = vadd.f32 %v469, %v455
    %v471 = vadd.f32 %v470, %v456
    %v472 = vadd.f32 %v471, %v457
    %v473 = vadd.f32 %v472, %v458
    %v474 = vadd.f32 %v473, %v459
    %v475 = vadd.f32 %v474, %v460
    %v476 = vadd.f32 %v475, %v461
    %v477 = vadd.f32 %v476, %v462
    %v478 = vadd.f32 %v477, %v463
    %v479 = vadd.f32 %v478, %v464
    %v480 = vadd.f32 %v479, %v465
    %v481 = vadd.f32 %v480, %v466
    %v482 = vrot.slane %v481, 4
    %v483 = vadd.f32 %v481, %v482
    %v484 = vrot.slane %v483, 2
    %v485 = vadd.f32 %v483, %v484
    %v486 = vrot.slane %v485, 1
    %v487 = vadd.f32 %v485, %v486
    %vm488 = vcmask 1040384
    %v489 = vsel %vm488, %v450, %v487
    %vm490 = vcmask 1041408
    %v491 = vsel %vm490, %v489, 0.0
    %492 = vst [vmem:[%s3] sm:$0xff] %v491
  $region17: #{unet_skip_conn_block.4} parent=0 // pred_fallthru
    _
  // Predicated region
  $region18: #{unet_skip_conn_block.4} parent=0 // pred_check
    _
  $region19: #{unet_skip_conn_block.4} parent=0 // pred_check_branch
    %494 = sbr.rel (0) target = $region21
  $region20: #{unet_skip_conn_block.4} parent=0 // pred_region
    _
  $region21: #{unet_skip_conn_block.4} parent=0 // pred_fallthru
    _
  // Predicated region
  $region22: #{unet_skip_conn_block.4} parent=0 // pred_check
    _
  $region23: #{unet_skip_conn_block.4} parent=0 // pred_check_branch
    %496 = sbr.rel (0) target = $region25
  $region24: #{unet_skip_conn_block.4} parent=0 // pred_region
    _
  $region25: #{unet_skip_conn_block.4} parent=0 // pred_fallthru
    _
  // Predicated region
  $region26: #{unet_skip_conn_block.4} parent=0 // pred_check
    _
  $region27: #{unet_skip_conn_block.4} parent=0 // pred_check_branch
    %498 = sbr.rel (0) target = $region29
  $region28: #{unet_skip_conn_block.4} parent=0 // pred_region
    _
  $region29: #{unet_skip_conn_block.4} parent=0 // pred_fallthru
    _
  // Predicated region
  $region30: #{unet_skip_conn_block.4} parent=0 // pred_check
    _
  $region31: #{unet_skip_conn_block.4} parent=0 // pred_check_branch
    %500 = sbr.rel (0) target = $region33
  $region32: #{unet_skip_conn_block.4} parent=0 // pred_region
    _
  $region33: #{unet_skip_conn_block.4} parent=0 // pred_fallthru
    _

// kernel: unet_skip_conn_block.6
$region0: #{unet_skip_conn_block.6}
  #allocation0 [shape = 'u32[]', space=smem, size = 0x4, offset = 0x4, fixed_abs, tag = 'smem constant byte address 0x4 - core index']
  #allocation1 [shape = 'u32[144,128]{1,0:T(1,128)}', space=vmem, size = 0x12000, scoped, tag = 'internal scratch']
  #allocation2 [shape = 'f32[128,128]{1,0:T(8,128)}', space=vmem, size = 0x10000, scoped, tag = 'scratch operand']
  %s0 = inlined_call_operand.vmem [shape: bf16[4,128,128], index: 0, kind: input, shape index: {}]
  %s1 = inlined_call_operand.vmem [shape: bf16[4,128,128], index: 1, kind: input, shape index: {}]
  %s2 = inlined_call_operand.vmem [shape: bf16[4,128,128], index: 2, kind: output, shape index: {0}]
  %s3 = inlined_call_operand.vmem [shape: f32[4,1,8,128], index: 3, kind: output, shape index: {1}]
  %4 = xla_tuple %s2, %s3
  %s5 = sld [smem:[#allocation0]]
  $region57: #{unet_skip_conn_block.6} parent=0
    _
  %s7 = ssub.s32 1, %s5
  %s8 = scalar_select 0, %s7, %s5
  loop: start=0, step=1, limit=6
  $region2: #{unet_skip_conn_block.6} parent=0 // loop_pre_header
    _
  $region3: #{unet_skip_conn_block.6} parent=0 // loop_header
    %s10 = sphi 0, %s14
    %p11 = scmp.ge.s32.totalorder %s10, 6
    %s17 = sphi 0, %s36
    %s18 = sphi 0, %s32
    %s19 = sphi 0, %s28
    %s20 = sphi 0, %s17
    %s21 = sphi 0, %s18
    %s22 = sphi 0, %s19
    %s23 = sphi 0, %s20
    %s24 = sphi 0, %s21
    %s25 = sphi 0, %s22
    %s43 = sphi 0, %s45
    %s46 = sphi 0, %s43
    %s47 = sphi 0, %s46
    %s63 = sphi 0, %s47
    %s71 = sphi 0, %s73
    %s74 = sphi 0, %s71
    %s75 = sphi 0, %s74
    %s91 = sphi 0, %s75
    %s99 = sphi 0, %s101
    %s102 = sphi 0, %s99
    %s103 = sphi 0, %s102
    %s119 = sphi 0, %s103
    %s127 = sphi 0, %s129
    %s130 = sphi 0, %s127
    %s131 = sphi 0, %s130
    %s147 = sphi 0, %s131
  $region4: #{unet_skip_conn_block.6} parent=0 // loop_header_branch
    %13 = sbr.rel (%p11) target = $region8
  $region5: #{unet_skip_conn_block.6} parent=0 // loop_body
    %s15 = ssub.s32 %s10, 1
    %s16 = ssub.s32 %s10, 2
    %s26 = sadd.s32 1, %s19
    %p27 = scmp.ge.s32.totalorder %s26, 1
    %s28 = scalar_select %p27, 0, %s26
    %s29 = sadd.s32 1, %s18
    %s30 = scalar_select %p27, %s29, %s18
    %p31 = scmp.ge.s32.totalorder %s30, 1
    %s32 = scalar_select %p31, 0, %s30
    %s33 = sadd.s32 1, %s17
    %s34 = scalar_select %p31, %s33, %s17
    %p35 = scmp.ge.s32.totalorder %s34, 4
    %s36 = scalar_select %p35, 0, %s34
    %s37 = ssub.s32 %s17, %s36
    %s38 = ssub.s32 %s18, %s32
    %s39 = sor.u32 %s37, %s38
    %s40 = ssub.s32 %s19, %s28
    %s41 = sor.u32 %s39, %s40
    %p42 = scmp.eq.s32.totalorder %s41, 0
    %s44 = sadd.s32 %s43, 1
    %s45 = scalar_select %p42, %s43, %s44
    %p48 = pneg %p42
    %p49 = scmp.eq.s32.totalorder %s10, 3
    %p50 = por %p48, %p49
    %p51 = scmp.ne.s32.totalorder %s43, %s46
    %p52 = scmp.eq.s32.totalorder %s10, 0
    %p53 = por %p51, %p52
    %p54 = scmp.ne.s32.totalorder %s43, %s46
    %p55 = scmp.eq.s32.totalorder %s15, 3
    %p56 = por %p54, %p55
    %p57 = scmp.ne.s32.totalorder %s46, %s47
    %p58 = scmp.eq.s32.totalorder %s15, 0
    %p59 = por %p57, %p58
    %p60 = scmp.ne.s32.totalorder %s46, %s47
    %p61 = scmp.eq.s32.totalorder %s16, 3
    %p62 = por %p60, %p61
    %p64 = scmp.ne.s32.totalorder %s47, %s63
    %p65 = scmp.eq.s32.totalorder %s16, 0
    %p66 = por %p64, %p65
    %s67 = ssub.s32 %s17, %s36
    %s68 = ssub.s32 %s19, %s28
    %s69 = sor.u32 %s67, %s68
    %p70 = scmp.eq.s32.totalorder %s69, 0
    %s72 = sadd.s32 %s71, 1
    %s73 = scalar_select %p70, %s71, %s72
    %p76 = pneg %p70
    %p77 = scmp.eq.s32.totalorder %s10, 3
    %p78 = por %p76, %p77
    %p79 = scmp.ne.s32.totalorder %s71, %s74
    %p80 = scmp.eq.s32.totalorder %s10, 0
    %p81 = por %p79, %p80
    %p82 = scmp.ne.s32.totalorder %s71, %s74
    %p83 = scmp.eq.s32.totalorder %s15, 3
    %p84 = por %p82, %p83
    %p85 = scmp.ne.s32.totalorder %s74, %s75
    %p86 = scmp.eq.s32.totalorder %s15, 0
    %p87 = por %p85, %p86
    %p88 = scmp.ne.s32.totalorder %s74, %s75
    %p89 = scmp.eq.s32.totalorder %s16, 3
    %p90 = por %p88, %p89
    %p92 = scmp.ne.s32.totalorder %s75, %s91
    %p93 = scmp.eq.s32.totalorder %s16, 0
    %p94 = por %p92, %p93
    %s95 = ssub.s32 %s17, %s36
    %s96 = ssub.s32 %s18, %s32
    %s97 = sor.u32 %s95, %s96
    %p98 = scmp.eq.s32.totalorder %s97, 0
    %s100 = sadd.s32 %s99, 1
    %s101 = scalar_select %p98, %s99, %s100
    %p104 = pneg %p98
    %p105 = scmp.eq.s32.totalorder %s10, 3
    %p106 = por %p104, %p105
    %p107 = scmp.ne.s32.totalorder %s99, %s102
    %p108 = scmp.eq.s32.totalorder %s10, 0
    %p109 = por %p107, %p108
    %p110 = scmp.ne.s32.totalorder %s99, %s102
    %p111 = scmp.eq.s32.totalorder %s15, 3
    %p112 = por %p110, %p111
    %p113 = scmp.ne.s32.totalorder %s102, %s103
    %p114 = scmp.eq.s32.totalorder %s15, 0
    %p115 = por %p113, %p114
    %p116 = scmp.ne.s32.totalorder %s102, %s103
    %p117 = scmp.eq.s32.totalorder %s16, 3
    %p118 = por %p116, %p117
    %p120 = scmp.ne.s32.totalorder %s103, %s119
    %p121 = scmp.eq.s32.totalorder %s16, 0
    %p122 = por %p120, %p121
    %s123 = ssub.s32 %s17, %s36
    %s124 = ssub.s32 %s18, %s32
    %s125 = sor.u32 %s123, %s124
    %p126 = scmp.eq.s32.totalorder %s125, 0
    %s128 = sadd.s32 %s127, 1
    %s129 = scalar_select %p126, %s127, %s128
    %p132 = pneg %p126
    %p133 = scmp.eq.s32.totalorder %s10, 3
    %p134 = por %p132, %p133
    %p135 = scmp.ne.s32.totalorder %s127, %s130
    %p136 = scmp.eq.s32.totalorder %s10, 0
    %p137 = por %p135, %p136
    %p138 = scmp.ne.s32.totalorder %s127, %s130
    %p139 = scmp.eq.s32.totalorder %s15, 3
    %p140 = por %p138, %p139
    %p141 = scmp.ne.s32.totalorder %s130, %s131
    %p142 = scmp.eq.s32.totalorder %s15, 0
    %p143 = por %p141, %p142
    %p144 = scmp.ne.s32.totalorder %s130, %s131
    %p145 = scmp.eq.s32.totalorder %s16, 3
    %p146 = por %p144, %p145
    %p148 = scmp.ne.s32.totalorder %s131, %s147
    %p149 = scmp.eq.s32.totalorder %s16, 0
    %p150 = por %p148, %p149
    %p151 = scmp.le.s32.totalorder 1, %s10
    %p152 = scmp.lt.s32.totalorder %s10, 5
    %p153 = pnand %p151, %p152
    %p154 = pneg %p153
    // Predicated region
    $region9: #{unet_skip_conn_block.6} parent=5 // pred_check
      _
    $region10: #{unet_skip_conn_block.6} parent=5 // pred_check_branch
      %156 = sbr.rel (%p153) target = $region12
    $region11: #{unet_skip_conn_block.6} parent=5 // pred_region
      %s157 = ssub.s32 %s10, 1
    $region12: #{unet_skip_conn_block.6} parent=5 // pred_fallthru
      _
    %p158 = scmp.lt.s32.totalorder %s10, 4
    // Predicated region
    $region13: #{unet_skip_conn_block.6} parent=5 // pred_check
      %p159 = pneg %p158
    $region14: #{unet_skip_conn_block.6} parent=5 // pred_check_branch
      %161 = sbr.rel (%p159) target = $region16
    $region15: #{unet_skip_conn_block.6} parent=5 // pred_region
      // Predicated region
      $region17: #{unet_skip_conn_block.6} parent=15 // pred_check
        %p162 = pneg %p53
      $region18: #{unet_skip_conn_block.6} parent=15 // pred_check_branch
        %164 = sbr.rel (%p162) target = $region20
      $region19: #{unet_skip_conn_block.6} parent=15 // pred_region
        %s165 = smul.u32 16, %s18
        %p166 = scmp.lt.s32.totalorder %s17, 3
        %s167 = scalar_select %p166, %s17, 3
        %p168 = scmp.lt.s32.totalorder %s165, 15
        %s169 = scalar_select %p168, %s165, 15
        %p170 = scmp.lt.s32.totalorder %s19, 0
        %s171 = scalar_select %p170, %s19, 0
        %s172 = sadd.s32 %s171, %s169
        %s173 = smul.addr %s167, 16
        %s174 = sadd.s32 %s172, %s173
        %s175 = smul.addr %s174, 4
        %s176 = scalar_lea.vmem %s0, %s175
        %s177 = smul.u32 16, %s18
      $region20: #{unet_skip_conn_block.6} parent=15 // pred_fallthru
        _
      // Predicated region
      $region21: #{unet_skip_conn_block.6} parent=15 // pred_check
        %p178 = pneg %p81
      $region22: #{unet_skip_conn_block.6} parent=15 // pred_check_branch
        %180 = sbr.rel (%p178) target = $region24
      $region23: #{unet_skip_conn_block.6} parent=15 // pred_region
        %s181 = smul.u32 16, %s19
        %p182 = scmp.lt.s32.totalorder %s17, 3
        %s183 = scalar_select %p182, %s17, 3
        %p184 = scmp.lt.s32.totalorder %s181, 15
        %s185 = scalar_select %p184, %s181, 15
        %s186 = smul.addr %s183, 16
        %s187 = sadd.s32 %s185, %s186
        %s188 = smul.addr %s187, 4
        %s189 = scalar_lea.vmem %s1, %s188
        %s190 = smul.u32 16, %s19
      $region24: #{unet_skip_conn_block.6} parent=15 // pred_fallthru
        _
    $region16: #{unet_skip_conn_block.6} parent=5 // pred_fallthru
      _
    %p191 = scmp.le.s32.totalorder 1, %s10
    %p192 = scmp.lt.s32.totalorder %s10, 5
    %p193 = pnand %p191, %p192
    %p194 = pneg %p193
    // Predicated region
    $region25: #{unet_skip_conn_block.6} parent=5 // pred_check
      _
    $region26: #{unet_skip_conn_block.6} parent=5 // pred_check_branch
      %196 = sbr.rel (%p193) target = $region28
    $region27: #{unet_skip_conn_block.6} parent=5 // pred_region
      %s197 = ssub.s32 %s10, 1
      %s198 = smul.u32 16, %s21
      %p199 = scmp.lt.s32.totalorder %s20, 3
      %s200 = scalar_select %p199, %s20, 3
      %p201 = scmp.lt.s32.totalorder %s198, 15
      %s202 = scalar_select %p201, %s198, 15
      %p203 = scmp.lt.s32.totalorder %s22, 0
      %s204 = scalar_select %p203, %s22, 0
      %s205 = sadd.s32 %s204, %s202
      %s206 = smul.addr %s200, 16
      %s207 = sadd.s32 %s205, %s206
      %s208 = smul.addr %s207, 4
      %s209 = scalar_lea.vmem %s0, %s208
      %p210 = pneg %p59
      %p211 = pneg %p56
      %s212 = smul.u32 16, %s22
      %p213 = scmp.lt.s32.totalorder %s20, 3
      %s214 = scalar_select %p213, %s20, 3
      %p215 = scmp.lt.s32.totalorder %s212, 15
      %s216 = scalar_select %p215, %s212, 15
      %s217 = smul.addr %s214, 16
      %s218 = sadd.s32 %s216, %s217
      %s219 = smul.addr %s218, 4
      %s220 = scalar_lea.vmem %s1, %s219
      %p221 = pneg %p87
      %p222 = pneg %p84
      %p223 = pneg %p115
      %p224 = pneg %p112
      %s225 = smul.u32 16, %s21
      %p226 = scmp.lt.s32.totalorder %s20, 3
      %s227 = scalar_select %p226, %s20, 3
      %p228 = scmp.lt.s32.totalorder %s225, 15
      %s229 = scalar_select %p228, %s225, 15
      %s230 = smul.addr %s227, 16
      %s231 = sadd.s32 %s229, %s230
      %s232 = smul.addr %s231, 4
      %s233 = scalar_lea.vmem %s2, %s232
      %p234 = pneg %p143
      %p235 = pneg %p140
      %p236 = scmp.lt.s32.totalorder %s20, 3
      %s237 = scalar_select %p236, %s20, 3
      %p238 = scmp.lt.s32.totalorder %s21, 0
      %s239 = scalar_select %p238, %s21, 0
      %s240 = sadd.s32 %s239, %s237
      %s241 = smul.addr %s240, 8
      %s242 = scalar_lea.vmem %s3, %s241
      %s243 = smul.u32 16, %s21
      %p244 = scmp.lt.s32.totalorder %s20, 3
      %s245 = scalar_select %p244, %s20, 3
      %p246 = scmp.lt.s32.totalorder %s243, 15
      %s247 = scalar_select %p246, %s243, 15
      %p248 = scmp.lt.s32.totalorder %s22, 0
      %s249 = scalar_select %p248, %s22, 0
      %s250 = sadd.s32 %s249, %s247
      %s251 = smul.addr %s245, 16
      %s252 = sadd.s32 %s250, %s251
      %s253 = smul.addr %s252, 4
      %s254 = scalar_lea.vmem %s0, %s253
      %s255 = smul.u32 16, %s21
      %s256 = smul.u32 16, %s22
      %p257 = scmp.lt.s32.totalorder %s20, 3
      %s258 = scalar_select %p257, %s20, 3
      %p259 = scmp.lt.s32.totalorder %s256, 15
      %s260 = scalar_select %p259, %s256, 15
      %s261 = smul.addr %s258, 16
      %s262 = sadd.s32 %s260, %s261
      %s263 = smul.addr %s262, 4
      %s264 = scalar_lea.vmem %s1, %s263
      %s265 = smul.u32 16, %s22
      %s266 = smul.u32 16, %s21
      %p267 = scmp.lt.s32.totalorder %s20, 3
      %s268 = scalar_select %p267, %s20, 3
      %p269 = scmp.lt.s32.totalorder %s266, 15
      %s270 = scalar_select %p269, %s266, 15
      %s271 = smul.addr %s268, 16
      %s272 = sadd.s32 %s270, %s271
      %s273 = smul.addr %s272, 4
      %s274 = scalar_lea.vmem %s2, %s273
      %s275 = smul.u32 16, %s21
      %p276 = scmp.lt.s32.totalorder %s20, 3
      %s277 = scalar_select %p276, %s20, 3
      %p278 = scmp.lt.s32.totalorder %s21, 0
      %s279 = scalar_select %p278, %s21, 0
      %s280 = sadd.s32 %s279, %s277
      %s281 = smul.addr %s280, 8
      %s282 = scalar_lea.vmem %s3, %s281
      %p284 = scmp.eq.s32.totalorder %s22, 0
      // Predicated region
      $region29: #{unet_skip_conn_block.6} parent=27 // pred_check
        %p285 = pneg %p284
      $region30: #{unet_skip_conn_block.6} parent=27 // pred_check_branch
        %287 = sbr.rel (%p285) target = $region32
      $region31: #{unet_skip_conn_block.6} parent=27 // pred_region
        %288 = vst [vmem:[#allocation2] sm:$0xff] 0.0
        %289 = vst [vmem:[#allocation2 + $0x8] sm:$0xff] 0.0
        %290 = vst [vmem:[#allocation2 + $0x10] sm:$0xff] 0.0
        %291 = vst [vmem:[#allocation2 + $0x18] sm:$0xff] 0.0
        %292 = vst [vmem:[#allocation2 + $0x20] sm:$0xff] 0.0
        %293 = vst [vmem:[#allocation2 + $0x28] sm:$0xff] 0.0
        %294 = vst [vmem:[#allocation2 + $0x30] sm:$0xff] 0.0
        %295 = vst [vmem:[#allocation2 + $0x38] sm:$0xff] 0.0
        %296 = vst [vmem:[#allocation2 + $0x40] sm:$0xff] 0.0
        %297 = vst [vmem:[#allocation2 + $0x48] sm:$0xff] 0.0
        %298 = vst [vmem:[#allocation2 + $0x50] sm:$0xff] 0.0
        %299 = vst [vmem:[#allocation2 + $0x58] sm:$0xff] 0.0
        %300 = vst [vmem:[#allocation2 + $0x60] sm:$0xff] 0.0
        %301 = vst [vmem:[#allocation2 + $0x68] sm:$0xff] 0.0
        %302 = vst [vmem:[#allocation2 + $0x70] sm:$0xff] 0.0
        %303 = vst [vmem:[#allocation2 + $0x78] sm:$0xff] 0.0
      $region32: #{unet_skip_conn_block.6} parent=27 // pred_fallthru
        _
      %v304 = vld [vmem:[%s254] sm:$0xf]
      %v305 = vld [vmem:[%s254 + $0x4] sm:$0xf]
      %v306 = vld [vmem:[%s254 + $0x8] sm:$0xf]
      %v307 = vld [vmem:[%s254 + $0xc] sm:$0xf]
      %v308 = vld [vmem:[%s254 + $0x10] sm:$0xf]
      %v309 = vld [vmem:[%s254 + $0x14] sm:$0xf]
      %v310 = vld [vmem:[%s254 + $0x18] sm:$0xf]
      %v311 = vld [vmem:[%s254 + $0x1c] sm:$0xf]
      %v312 = vld [vmem:[%s254 + $0x20] sm:$0xf]
      %v313 = vld [vmem:[%s254 + $0x24] sm:$0xf]
      %v314 = vld [vmem:[%s254 + $0x28] sm:$0xf]
      %v315 = vld [vmem:[%s254 + $0x2c] sm:$0xf]
      %v316 = vld [vmem:[%s254 + $0x30] sm:$0xf]
      %v317 = vld [vmem:[%s254 + $0x34] sm:$0xf]
      %v318 = vld [vmem:[%s254 + $0x38] sm:$0xf]
      %v319 = vld [vmem:[%s254 + $0x3c] sm:$0xf]
      %v320 = vunpack.c.l.bf16 %v304
      %v321 = vunpack.c.l.bf16 %v305
      %v322 = vunpack.c.l.bf16 %v306
      %v323 = vunpack.c.l.bf16 %v307
      %v324 = vunpack.c.l.bf16 %v308
      %v325 = vunpack.c.l.bf16 %v309
      %v326 = vunpack.c.l.bf16 %v310
      %v327 = vunpack.c.l.bf16 %v311
      %v328 = vunpack.c.l.bf16 %v312
      %v329 = vunpack.c.l.bf16 %v313
      %v330 = vunpack.c.l.bf16 %v314
      %v331 = vunpack.c.l.bf16 %v315
      %v332 = vunpack.c.l.bf16 %v316
      %v333 = vunpack.c.l.bf16 %v317
      %v334 = vunpack.c.l.bf16 %v318
      %v335 = vunpack.c.l.bf16 %v319
      %vm336 = vcmp.ge.f32.partialorder %v320, 0.0
      %vm337 = vcmp.ge.f32.partialorder %v321, 0.0
      %vm338 = vcmp.ge.f32.partialorder %v322, 0.0
      %vm339 = vcmp.ge.f32.partialorder %v323, 0.0
      %vm340 = vcmp.ge.f32.partialorder %v324, 0.0
      %vm341 = vcmp.ge.f32.partialorder %v325, 0.0
      %vm342 = vcmp.ge.f32.partialorder %v326, 0.0
      %vm343 = vcmp.ge.f32.partialorder %v327, 0.0
      %vm344 = vcmp.ge.f32.partialorder %v328, 0.0
      %vm345 = vcmp.ge.f32.partialorder %v329, 0.0
      %vm346 = vcmp.ge.f32.partialorder %v330, 0.0
      %vm347 = vcmp.ge.f32.partialorder %v331, 0.0
      %vm348 = vcmp.ge.f32.partialorder %v332, 0.0
      %vm349 = vcmp.ge.f32.partialorder %v333, 0.0
      %vm350 = vcmp.ge.f32.partialorder %v334, 0.0
      %vm351 = vcmp.ge.f32.partialorder %v335, 0.0
      %v352 = vmul.f32 %v320, 0.0
      %v353 = vmul.f32 %v321, 0.0
      %v354 = vmul.f32 %v322, 0.0
      %v355 = vmul.f32 %v323, 0.0
      %v356 = vmul.f32 %v324, 0.0
      %v357 = vmul.f32 %v325, 0.0
      %v358 = vmul.f32 %v326, 0.0
      %v359 = vmul.f32 %v327, 0.0
      %v360 = vmul.f32 %v328, 0.0
      %v361 = vmul.f32 %v329, 0.0
      %v362 = vmul.f32 %v330, 0.0
      %v363 = vmul.f32 %v331, 0.0
      %v364 = vmul.f32 %v332, 0.0
      %v365 = vmul.f32 %v333, 0.0
      %v366 = vmul.f32 %v334, 0.0
      %v367 = vmul.f32 %v335, 0.0
      %v368 = vsel %vm336, %v320, %v352
      %v369 = vsel %vm337, %v321, %v353
      %v370 = vsel %vm338, %v322, %v354
      %v371 = vsel %vm339, %v323, %v355
      %v372 = vsel %vm340, %v324, %v356
      %v373 = vsel %vm341, %v325, %v357
      %v374 = vsel %vm342, %v326, %v358
      %v375 = vsel %vm343, %v327, %v359
      %v376 = vsel %vm344, %v328, %v360
      %v377 = vsel %vm345, %v329, %v361
      %v378 = vsel %vm346, %v330, %v362
      %v379 = vsel %vm347, %v331, %v363
      %v380 = vsel %vm348, %v332, %v364
      %v381 = vsel %vm349, %v333, %v365
      %v382 = vsel %vm350, %v334, %v366
      %v383 = vsel %vm351, %v335, %v367
      %v384 = vld [vmem:[#allocation2] sm:$0xff]
      %v385 = vld [vmem:[#allocation2 + $0x8] sm:$0xff]
      %v386 = vld [vmem:[#allocation2 + $0x10] sm:$0xff]
      %v387 = vld [vmem:[#allocation2 + $0x18] sm:$0xff]
      %v388 = vld [vmem:[#allocation2 + $0x20] sm:$0xff]
      %v389 = vld [vmem:[#allocation2 + $0x28] sm:$0xff]
      %v390 = vld [vmem:[#allocation2 + $0x30] sm:$0xff]
      %v391 = vld [vmem:[#allocation2 + $0x38] sm:$0xff]
      %v392 = vld [vmem:[#allocation2 + $0x40] sm:$0xff]
      %v393 = vld [vmem:[#allocation2 + $0x48] sm:$0xff]
      %v394 = vld [vmem:[#allocation2 + $0x50] sm:$0xff]
      %v395 = vld [vmem:[#allocation2 + $0x58] sm:$0xff]
      %v396 = vld [vmem:[#allocation2 + $0x60] sm:$0xff]
      %v397 = vld [vmem:[#allocation2 + $0x68] sm:$0xff]
      %v398 = vld [vmem:[#allocation2 + $0x70] sm:$0xff]
      %v399 = vld [vmem:[#allocation2 + $0x78] sm:$0xff]
      %v400 = vpack.c.bf16 %v369, %v368
      %v401 = vpack.c.bf16 %v371, %v370
      %v402 = vpack.c.bf16 %v373, %v372
      %v403 = vpack.c.bf16 %v375, %v374
      %v404 = vpack.c.bf16 %v377, %v376
      %v405 = vpack.c.bf16 %v379, %v378
      %v406 = vpack.c.bf16 %v381, %v380
      %v407 = vpack.c.bf16 %v383, %v382
      %v408 = vld [vmem:[%s264] sm:$0xf]
      %v409 = vld [vmem:[%s264 + $0x4] sm:$0xf]
      %v410 = vld [vmem:[%s264 + $0x8] sm:$0xf]
      %v411 = vld [vmem:[%s264 + $0xc] sm:$0xf]
      %v412 = vld [vmem:[%s264 + $0x10] sm:$0xf]
      %v413 = vld [vmem:[%s264 + $0x14] sm:$0xf]
      %v414 = vld [vmem:[%s264 + $0x18] sm:$0xf]
      %v415 = vld [vmem:[%s264 + $0x1c] sm:$0xf]
      %v416 = vld [vmem:[%s264 + $0x20] sm:$0xf]
      %v417 = vld [vmem:[%s264 + $0x24] sm:$0xf]
      %v418 = vld [vmem:[%s264 + $0x28] sm:$0xf]
      %v419 = vld [vmem:[%s264 + $0x2c] sm:$0xf]
      %v420 = vld [vmem:[%s264 + $0x30] sm:$0xf]
      %v421 = vld [vmem:[%s264 + $0x34] sm:$0xf]
      %v422 = vld [vmem:[%s264 + $0x38] sm:$0xf]
      %v423 = vld [vmem:[%s264 + $0x3c] sm:$0xf]
      %v440 = vunpack.c.l.b16 %v408
      %v441 = vunpack.c.l.b16 %v409
      %v442 = vunpack.c.l.b16 %v410
      %v443 = vunpack.c.l.b16 %v411
      %v444 = vunpack.c.l.b16 %v412
      %v445 = vunpack.c.l.b16 %v413
      %v446 = vunpack.c.l.b16 %v414
      %v447 = vunpack.c.l.b16 %v415
      %v448 = vunpack.c.l.b16 %v416
      %v449 = vunpack.c.l.b16 %v417
      %v450 = vunpack.c.l.b16 %v418
      %v451 = vunpack.c.l.b16 %v419
      %v452 = vunpack.c.l.b16 %v420
      %v453 = vunpack.c.l.b16 %v421
      %v454 = vunpack.c.l.b16 %v422
      %v455 = vunpack.c.l.b16 %v423
      %v456 = vpack.c.b16 %v441, %v440
      %v457 = vpack.c.b16 %v443, %v442
      %v458 = vpack.c.b16 %v445, %v444
      %v459 = vpack.c.b16 %v447, %v446
      %v460 = vpack.c.b16 %v449, %v448
      %v461 = vpack.c.b16 %v451, %v450
      %v462 = vpack.c.b16 %v453, %v452
      %v463 = vpack.c.b16 %v455, %v454
      %472 = vmatprep.subr.bf16.mxu0 0
      %473 = vmatpush1.bf16.msra.mxu0 %v456
      %474 = vmatprep.subr.bf16.mxu0 0
      %475 = vmatpush1.bf16.msra.mxu0 %v457
      %476 = vmatprep.subr.bf16.mxu0 0
      %477 = vmatpush1.bf16.msra.mxu0 %v458
      %478 = vmatprep.subr.bf16.mxu0 0
      %479 = vmatpush1.bf16.msra.mxu0 %v459
      %480 = vmatprep.subr.bf16.mxu0 0
      %481 = vmatpush1.bf16.msra.mxu0 %v460
      %482 = vmatprep.subr.bf16.mxu0 0
      %483 = vmatpush1.bf16.msra.mxu0 %v461
      %484 = vmatprep.subr.bf16.mxu0 0
      %485 = vmatpush1.bf16.msra.mxu0 %v462
      %486 = vmatprep.subr.bf16.mxu0 0
      %487 = vmatpush1.bf16.msra.mxu0 %v463
      %488 = vmatprep.subr.bf16.mxu0 0
      %489 = vmatpush1.bf16.msra.mxu0 0
      %490 = vmatprep.subr.bf16.mxu0 0
      %491 = vmatpush1.bf16.msra.mxu0 0
      %492 = vmatprep.subr.bf16.mxu0 0
      %493 = vmatpush1.bf16.msra.mxu0 0
      %494 = vmatprep.subr.bf16.mxu0 0
      %495 = vmatpush1.bf16.msra.mxu0 0
      %496 = vmatprep.subr.bf16.mxu0 0
      %497 = vmatpush1.bf16.msra.mxu0 0
      %498 = vmatprep.subr.bf16.mxu0 0
      %499 = vmatpush1.bf16.msra.mxu0 0
      %500 = vmatprep.subr.bf16.mxu0 0
      %501 = vmatpush1.bf16.msra.mxu0 0
      %502 = vmatprep.subr.bf16.mxu0 0
      %503 = vmatpush1.bf16.msra.mxu0 0
      %504 = vmatprep.mubr.bf16.mxu0 0
      %505 = vmatmul.mubr.bf16.gmra.mrb[0].mxu0 %v400
      %v506 = vpop.f32.mrb[0].mxu0
      %v507 = vadd.f32 0.0, %v506
      %v508 = vpop.f32.mrb[0].mxu0
      %v509 = vpop.f32.mrb[0].mxu0
      %v510 = vadd.f32 0.0, %v509
      %v511 = vpop.f32.mrb[0].mxu0
      %512 = vmatprep.mubr.bf16.mxu0 0
      %513 = vmatmul.mubr.bf16.gmra.mrb[0].mxu0 %v401
      %v514 = vpop.f32.mrb[0].mxu0
      %v515 = vadd.f32 0.0, %v514
      %v516 = vpop.f32.mrb[0].mxu0
      %v517 = vpop.f32.mrb[0].mxu0
      %v518 = vadd.f32 0.0, %v517
      %v519 = vpop.f32.mrb[0].mxu0
      %520 = vmatprep.mubr.bf16.mxu0 0
      %521 = vmatmul.mubr.bf16.gmra.mrb[0].mxu0 %v402
      %v522 = vpop.f32.mrb[0].mxu0
      %v523 = vadd.f32 0.0, %v522
      %v524 = vpop.f32.mrb[0].mxu0
      %v525 = vpop.f32.mrb[0].mxu0
      %v526 = vadd.f32 0.0, %v525
      %v527 = vpop.f32.mrb[0].mxu0
      %528 = vmatprep.mubr.bf16.mxu0 0
      %529 = vmatmul.mubr.bf16.gmra.mrb[0].mxu0 %v403
      %v530 = vpop.f32.mrb[0].mxu0
      %v531 = vadd.f32 0.0, %v530
      %v532 = vpop.f32.mrb[0].mxu0
      %v533 = vpop.f32.mrb[0].mxu0
      %v534 = vadd.f32 0.0, %v533
      %v535 = vpop.f32.mrb[0].mxu0
      %536 = vmatprep.mubr.bf16.mxu0 0
      %537 = vmatmul.mubr.bf16.gmra.mrb[0].mxu0 %v404
      %v538 = vpop.f32.mrb[0].mxu0
      %v539 = vadd.f32 0.0, %v538
      %v540 = vpop.f32.mrb[0].mxu0
      %v541 = vpop.f32.mrb[0].mxu0
      %v542 = vadd.f32 0.0, %v541
      %v543 = vpop.f32.mrb[0].mxu0
      %544 = vmatprep.mubr.bf16.mxu0 0
      %545 = vmatmul.mubr.bf16.gmra.mrb[0].mxu0 %v405
      %v546 = vpop.f32.mrb[0].mxu0
      %v547 = vadd.f32 0.0, %v546
      %v548 = vpop.f32.mrb[0].mxu0
      %v549 = vpop.f32.mrb[0].mxu0
      %v550 = vadd.f32 0.0, %v549
      %v551 = vpop.f32.mrb[0].mxu0
      %552 = vmatprep.mubr.bf16.mxu0 0
      %553 = vmatmul.mubr.bf16.gmra.mrb[0].mxu0 %v406
      %v554 = vpop.f32.mrb[0].mxu0
      %v555 = vadd.f32 0.0, %v554
      %v556 = vpop.f32.mrb[0].mxu0
      %v557 = vpop.f32.mrb[0].mxu0
      %v558 = vadd.f32 0.0, %v557
      %v559 = vpop.f32.mrb[0].mxu0
      %560 = vmatprep.mubr.bf16.mxu0 0
      %561 = vmatmul.mubr.bf16.gmra.mrb[0].mxu0 %v407
      %v562 = vpop.f32.mrb[0].mxu0
      %v563 = vadd.f32 0.0, %v562
      %v564 = vpop.f32.mrb[0].mxu0
      %v565 = vpop.f32.mrb[0].mxu0
      %v566 = vadd.f32 0.0, %v565
      %v567 = vpop.f32.mrb[0].mxu0
      %568 = vdwg.mxu0
      %v569 = vadd.f32 %v384, %v507
      %v570 = vadd.f32 %v385, %v510
      %v571 = vadd.f32 %v386, %v515
      %v572 = vadd.f32 %v387, %v518
      %v573 = vadd.f32 %v388, %v523
      %v574 = vadd.f32 %v389, %v526
      %v575 = vadd.f32 %v390, %v531
      %v576 = vadd.f32 %v391, %v534
      %v577 = vadd.f32 %v392, %v539
      %v578 = vadd.f32 %v393, %v542
      %v579 = vadd.f32 %v394, %v547
      %v580 = vadd.f32 %v395, %v550
      %v581 = vadd.f32 %v396, %v555
      %v582 = vadd.f32 %v397, %v558
      %v583 = vadd.f32 %v398, %v563
      %v584 = vadd.f32 %v399, %v566
      %585 = vst [vmem:[#allocation2] sm:$0xff] %v569
      %586 = vst [vmem:[#allocation2 + $0x8] sm:$0xff] %v570
      %587 = vst [vmem:[#allocation2 + $0x10] sm:$0xff] %v571
      %588 = vst [vmem:[#allocation2 + $0x18] sm:$0xff] %v572
      %589 = vst [vmem:[#allocation2 + $0x20] sm:$0xff] %v573
      %590 = vst [vmem:[#allocation2 + $0x28] sm:$0xff] %v574
      %591 = vst [vmem:[#allocation2 + $0x30] sm:$0xff] %v575
      %592 = vst [vmem:[#allocation2 + $0x38] sm:$0xff] %v576
      %593 = vst [vmem:[#allocation2 + $0x40] sm:$0xff] %v577
      %594 = vst [vmem:[#allocation2 + $0x48] sm:$0xff] %v578
      %595 = vst [vmem:[#allocation2 + $0x50] sm:$0xff] %v579
      %596 = vst [vmem:[#allocation2 + $0x58] sm:$0xff] %v580
      %597 = vst [vmem:[#allocation2 + $0x60] sm:$0xff] %v581
      %598 = vst [vmem:[#allocation2 + $0x68] sm:$0xff] %v582
      %599 = vst [vmem:[#allocation2 + $0x70] sm:$0xff] %v583
      %600 = vst [vmem:[#allocation2 + $0x78] sm:$0xff] %v584
      // Predicated region
      $region33: #{unet_skip_conn_block.6} parent=27 // pred_check
        %p601 = pneg %p284
      $region34: #{unet_skip_conn_block.6} parent=27 // pred_check_branch
        %603 = sbr.rel (%p601) target = $region36
      $region35: #{unet_skip_conn_block.6} parent=27 // pred_region
        %v604 = vld [vmem:[#allocation2] sm:$0xff]
        %v605 = vld [vmem:[#allocation2 + $0x8] sm:$0xff]
        %v606 = vld [vmem:[#allocation2 + $0x10] sm:$0xff]
        %v607 = vld [vmem:[#allocation2 + $0x18] sm:$0xff]
        %v608 = vld [vmem:[#allocation2 + $0x20] sm:$0xff]
        %v609 = vld [vmem:[#allocation2 + $0x28] sm:$0xff]
        %v610 = vld [vmem:[#allocation2 + $0x30] sm:$0xff]
        %v611 = vld [vmem:[#allocation2 + $0x38] sm:$0xff]
        %v612 = vld [vmem:[#allocation2 + $0x40] sm:$0xff]
        %v613 = vld [vmem:[#allocation2 + $0x48] sm:$0xff]
        %v614 = vld [vmem:[#allocation2 + $0x50] sm:$0xff]
        %v615 = vld [vmem:[#allocation2 + $0x58] sm:$0xff]
        %v616 = vld [vmem:[#allocation2 + $0x60] sm:$0xff]
        %v617 = vld [vmem:[#allocation2 + $0x68] sm:$0xff]
        %v618 = vld [vmem:[#allocation2 + $0x70] sm:$0xff]
        %v619 = vld [vmem:[#allocation2 + $0x78] sm:$0xff]
        %v620 = vpack.c.bf16 %v605, %v604
        %v621 = vpack.c.bf16 %v607, %v606
        %v622 = vpack.c.bf16 %v609, %v608
        %v623 = vpack.c.bf16 %v611, %v610
        %v624 = vpack.c.bf16 %v613, %v612
        %v625 = vpack.c.bf16 %v615, %v614
        %v626 = vpack.c.bf16 %v617, %v616
        %v627 = vpack.c.bf16 %v619, %v618
        %v636 = vunpack.c.l.b16 %v620
        %v637 = vunpack.c.h.b16 %v620
        %v638 = vunpack.c.l.b16 %v621
        %v639 = vunpack.c.h.b16 %v621
        %v640 = vunpack.c.l.b16 %v622
        %v641 = vunpack.c.h.b16 %v622
        %v642 = vunpack.c.l.b16 %v623
        %v643 = vunpack.c.h.b16 %v623
        %v644 = vunpack.c.l.b16 %v624
        %v645 = vunpack.c.h.b16 %v624
        %v646 = vunpack.c.l.b16 %v625
        %v647 = vunpack.c.h.b16 %v625
        %v648 = vunpack.c.l.b16 %v626
        %v649 = vunpack.c.h.b16 %v626
        %v650 = vunpack.c.l.b16 %v627
        %v651 = vunpack.c.h.b16 %v627
        %v652 = vpack.c.b16 %v636, %v636
        %v653 = vpack.c.b16 %v637, %v637
        %v654 = vpack.c.b16 %v638, %v638
        %v655 = vpack.c.b16 %v639, %v639
        %v656 = vpack.c.b16 %v640, %v640
        %v657 = vpack.c.b16 %v641, %v641
        %v658 = vpack.c.b16 %v642, %v642
        %v659 = vpack.c.b16 %v643, %v643
        %v660 = vpack.c.b16 %v644, %v644
        %v661 = vpack.c.b16 %v645, %v645
        %v662 = vpack.c.b16 %v646, %v646
        %v663 = vpack.c.b16 %v647, %v647
        %v664 = vpack.c.b16 %v648, %v648
        %v665 = vpack.c.b16 %v649, %v649
        %v666 = vpack.c.b16 %v650, %v650
        %v667 = vpack.c.b16 %v651, %v651
        %684 = vst [vmem:[%s274] sm:$0xf] %v652
        %685 = vst [vmem:[%s274 + $0x4] sm:$0xf] %v653
        %686 = vst [vmem:[%s274 + $0x8] sm:$0xf] %v654
        %687 = vst [vmem:[%s274 + $0xc] sm:$0xf] %v655
        %688 = vst [vmem:[%s274 + $0x10] sm:$0xf] %v656
        %689 = vst [vmem:[%s274 + $0x14] sm:$0xf] %v657
        %690 = vst [vmem:[%s274 + $0x18] sm:$0xf] %v658
        %691 = vst [vmem:[%s274 + $0x1c] sm:$0xf] %v659
        %692 = vst [vmem:[%s274 + $0x20] sm:$0xf] %v660
        %693 = vst [vmem:[%s274 + $0x24] sm:$0xf] %v661
        %694 = vst [vmem:[%s274 + $0x28] sm:$0xf] %v662
        %695 = vst [vmem:[%s274 + $0x2c] sm:$0xf] %v663
        %696 = vst [vmem:[%s274 + $0x30] sm:$0xf] %v664
        %697 = vst [vmem:[%s274 + $0x34] sm:$0xf] %v665
        %698 = vst [vmem:[%s274 + $0x38] sm:$0xf] %v666
        %699 = vst [vmem:[%s274 + $0x3c] sm:$0xf] %v667
        %v700 = vadd.f32 %v604, %v605
        %v701 = vadd.f32 %v700, %v606
        %v702 = vadd.f32 %v701, %v607
        %v703 = vadd.f32 %v702, %v608
        %v704 = vadd.f32 %v703, %v609
        %v705 = vadd.f32 %v704, %v610
        %v706 = vadd.f32 %v705, %v611
        %v707 = vadd.f32 %v706, %v612
        %v708 = vadd.f32 %v707, %v613
        %v709 = vadd.f32 %v708, %v614
        %v710 = vadd.f32 %v709, %v615
        %v711 = vadd.f32 %v710, %v616
        %v712 = vadd.f32 %v711, %v617
        %v713 = vadd.f32 %v712, %v618
        %v714 = vadd.f32 %v713, %v619
        %v715 = vrot.slane %v714, 4
        %v716 = vadd.f32 %v714, %v715
        %v717 = vrot.slane %v716, 2
        %v718 = vadd.f32 %v716, %v717
        %v719 = vrot.slane %v718, 1
        %v720 = vadd.f32 %v718, %v719
        %v721 = vmul.f32 %v604, %v604
        %v722 = vmul.f32 %v605, %v605
        %v723 = vmul.f32 %v606, %v606
        %v724 = vmul.f32 %v607, %v607
        %v725 = vmul.f32 %v608, %v608
        %v726 = vmul.f32 %v609, %v609
        %v727 = vmul.f32 %v610, %v610
        %v728 = vmul.f32 %v611, %v611
        %v729 = vmul.f32 %v612, %v612
        %v730 = vmul.f32 %v613, %v613
        %v731 = vmul.f32 %v614, %v614
        %v732 = vmul.f32 %v615, %v615
        %v733 = vmul.f32 %v616, %v616
        %v734 = vmul.f32 %v617, %v617
        %v735 = vmul.f32 %v618, %v618
        %v736 = vmul.f32 %v619, %v619
        %v737 = vadd.f32 %v721, %v722
        %v738 = vadd.f32 %v737, %v723
        %v739 = vadd.f32 %v738, %v724
        %v740 = vadd.f32 %v739, %v725
        %v741 = vadd.f32 %v740, %v726
        %v742 = vadd.f32 %v741, %v727
        %v743 = vadd.f32 %v742, %v728
        %v744 = vadd.f32 %v743, %v729
        %v745 = vadd.f32 %v744, %v730
        %v746 = vadd.f32 %v745, %v731
        %v747 = vadd.f32 %v746, %v732
        %v748 = vadd.f32 %v747, %v733
        %v749 = vadd.f32 %v748, %v734
        %v750 = vadd.f32 %v749, %v735
        %v751 = vadd.f32 %v750, %v736
        %v752 = vrot.slane %v751, 4
        %v753 = vadd.f32 %v751, %v752
        %v754 = vrot.slane %v753, 2
        %v755 = vadd.f32 %v753, %v754
        %v756 = vrot.slane %v755, 1
        %v757 = vadd.f32 %v755, %v756
        %vm758 = vcmask 1040384
        %v759 = vsel %vm758, %v720, %v757
        %vm760 = vcmask 1041408
        %v761 = vsel %vm760, %v759, 0.0
        %762 = vst [vmem:[%s282] sm:$0xff] %v761
      $region36: #{unet_skip_conn_block.6} parent=27 // pred_fallthru
        _
      %s763 = smul.u32 16, %s21
      %p764 = scmp.lt.s32.totalorder %s20, 3
      %s765 = scalar_select %p764, %s20, 3
      %p766 = scmp.lt.s32.totalorder %s763, 15
      %s767 = scalar_select %p766, %s763, 15
      %s768 = smul.addr %s765, 16
      %s769 = sadd.s32 %s767, %s768
      %s770 = smul.addr %s769, 4
      %s771 = scalar_lea.vmem %s2, %s770
      %p772 = scmp.lt.s32.totalorder %s20, 3
      %s773 = scalar_select %p772, %s20, 3
      %p774 = scmp.lt.s32.totalorder %s21, 0
      %s775 = scalar_select %p774, %s21, 0
      %s776 = sadd.s32 %s775, %s773
      %s777 = smul.addr %s776, 8
      %s778 = scalar_lea.vmem %s3, %s777
      // Predicated region
      $region37: #{unet_skip_conn_block.6} parent=27 // pred_check
        %p779 = pneg %p112
      $region38: #{unet_skip_conn_block.6} parent=27 // pred_check_branch
        %781 = sbr.rel (%p779) target = $region40
      $region39: #{unet_skip_conn_block.6} parent=27 // pred_region
        %s782 = smul.u32 16, %s21
      $region40: #{unet_skip_conn_block.6} parent=27 // pred_fallthru
        _
      // Predicated region
      $region41: #{unet_skip_conn_block.6} parent=27 // pred_check
        %p783 = pneg %p140
      $region42: #{unet_skip_conn_block.6} parent=27 // pred_check_branch
        %785 = sbr.rel (%p783) target = $region44
      $region43: #{unet_skip_conn_block.6} parent=27 // pred_region
        _
      $region44: #{unet_skip_conn_block.6} parent=27 // pred_fallthru
        _
    $region28: #{unet_skip_conn_block.6} parent=5 // pred_fallthru
      _
    %p786 = scmp.le.s32.totalorder 2, %s10
    // Predicated region
    $region45: #{unet_skip_conn_block.6} parent=5 // pred_check
      %p787 = pneg %p786
    $region46: #{unet_skip_conn_block.6} parent=5 // pred_check_branch
      %789 = sbr.rel (%p787) target = $region48
    $region47: #{unet_skip_conn_block.6} parent=5 // pred_region
      %s790 = ssub.s32 %s10, 2
      // Predicated region
      $region49: #{unet_skip_conn_block.6} parent=47 // pred_check
        %p791 = pneg %p118
      $region50: #{unet_skip_conn_block.6} parent=47 // pred_check_branch
        %793 = sbr.rel (%p791) target = $region52
      $region51: #{unet_skip_conn_block.6} parent=47 // pred_region
        %s794 = smul.u32 16, %s24
        %p795 = scmp.lt.s32.totalorder %s23, 3
        %s796 = scalar_select %p795, %s23, 3
        %p797 = scmp.lt.s32.totalorder %s794, 15
        %s798 = scalar_select %p797, %s794, 15
        %s799 = smul.addr %s796, 16
        %s800 = sadd.s32 %s798, %s799
        %s801 = smul.addr %s800, 4
        %s802 = scalar_lea.vmem %s2, %s801
      $region52: #{unet_skip_conn_block.6} parent=47 // pred_fallthru
        _
      // Predicated region
      $region53: #{unet_skip_conn_block.6} parent=47 // pred_check
        %p803 = pneg %p146
      $region54: #{unet_skip_conn_block.6} parent=47 // pred_check_branch
        %805 = sbr.rel (%p803) target = $region56
      $region55: #{unet_skip_conn_block.6} parent=47 // pred_region
        %p806 = scmp.lt.s32.totalorder %s23, 3
        %s807 = scalar_select %p806, %s23, 3
        %p808 = scmp.lt.s32.totalorder %s24, 0
        %s809 = scalar_select %p808, %s24, 0
        %s810 = sadd.s32 %s809, %s807
        %s811 = smul.addr %s810, 8
        %s812 = scalar_lea.vmem %s3, %s811
      $region56: #{unet_skip_conn_block.6} parent=47 // pred_fallthru
        _
    $region48: #{unet_skip_conn_block.6} parent=5 // pred_fallthru
      _
  $region6: #{unet_skip_conn_block.6} parent=0 // loop_footer
    %s14 = sadd.s32 1, %s10
  $region7: #{unet_skip_conn_block.6} parent=0 // loop_footer_branch
    %9 = sbr.rel target = $region3
  $region8: #{unet_skip_conn_block.6} parent=0 // loop_exit
    _

// kernel: unet_skip_conn_block.7
$region0: #{unet_skip_conn_block.7}
  #allocation0 [shape = 'u32[]', space=smem, size = 0x4, offset = 0x4, fixed_abs, tag = 'smem constant byte address 0x4 - core index']
  #allocation1 [shape = 'u32[144,128]{1,0:T(1,128)}', space=vmem, size = 0x12000, scoped, tag = 'internal scratch']
  %s0 = inlined_call_operand.vmem [shape: bf16[512,128], index: 0, kind: input, shape index: {}]
  %s1 = inlined_call_operand.vmem [shape: f32[1,128], index: 1, kind: input, shape index: {}]
  %s2 = inlined_call_operand.vmem [shape: f32[1,128], index: 2, kind: input, shape index: {}]
  %s3 = inlined_call_operand.vmem [shape: f32[512,128], index: 3, kind: output, shape index: {}]
  %s4 = sld [smem:[#allocation0]]
  $region22: #{unet_skip_conn_block.7} parent=0
    _
  %s6 = ssub.s32 1, %s4
  %s7 = scalar_select 0, %s6, %s4
  // Predicated region
  $region2: #{unet_skip_conn_block.7} parent=0 // pred_check
    _
  $region3: #{unet_skip_conn_block.7} parent=0 // pred_check_branch
    %9 = sbr.rel (0) target = $region5
  $region4: #{unet_skip_conn_block.7} parent=0 // pred_region
    _
  $region5: #{unet_skip_conn_block.7} parent=0 // pred_fallthru
    _
  // Predicated region
  $region6: #{unet_skip_conn_block.7} parent=0 // pred_check
    _
  $region7: #{unet_skip_conn_block.7} parent=0 // pred_check_branch
    %11 = sbr.rel (0) target = $region9
  $region8: #{unet_skip_conn_block.7} parent=0 // pred_region
    _
  $region9: #{unet_skip_conn_block.7} parent=0 // pred_fallthru
    _
  // Predicated region
  $region10: #{unet_skip_conn_block.7} parent=0 // pred_check
    _
  $region11: #{unet_skip_conn_block.7} parent=0 // pred_check_branch
    %13 = sbr.rel (0) target = $region13
  $region12: #{unet_skip_conn_block.7} parent=0 // pred_region
    _
  $region13: #{unet_skip_conn_block.7} parent=0 // pred_fallthru
    _
  %v14 = vld [vmem:[%s0] sm:$0xf]
  %v15 = vld [vmem:[%s0 + $0x4] sm:$0xf]
  %v16 = vld [vmem:[%s0 + $0x8] sm:$0xf]
  %v17 = vld [vmem:[%s0 + $0xc] sm:$0xf]
  %v18 = vld [vmem:[%s0 + $0x10] sm:$0xf]
  %v19 = vld [vmem:[%s0 + $0x14] sm:$0xf]
  %v20 = vld [vmem:[%s0 + $0x18] sm:$0xf]
  %v21 = vld [vmem:[%s0 + $0x1c] sm:$0xf]
  %v22 = vld [vmem:[%s0 + $0x20] sm:$0xf]
  %v23 = vld [vmem:[%s0 + $0x24] sm:$0xf]
  %v24 = vld [vmem:[%s0 + $0x28] sm:$0xf]
  %v25 = vld [vmem:[%s0 + $0x2c] sm:$0xf]
  %v26 = vld [vmem:[%s0 + $0x30] sm:$0xf]
  %v27 = vld [vmem:[%s0 + $0x34] sm:$0xf]
  %v28 = vld [vmem:[%s0 + $0x38] sm:$0xf]
  %v29 = vld [vmem:[%s0 + $0x3c] sm:$0xf]
  %v30 = vld [vmem:[%s0 + $0x40] sm:$0xf]
  %v31 = vld [vmem:[%s0 + $0x44] sm:$0xf]
  %v32 = vld [vmem:[%s0 + $0x48] sm:$0xf]
  %v33 = vld [vmem:[%s0 + $0x4c] sm:$0xf]
  %v34 = vld [vmem:[%s0 + $0x50] sm:$0xf]
  %v35 = vld [vmem:[%s0 + $0x54] sm:$0xf]
  %v36 = vld [vmem:[%s0 + $0x58] sm:$0xf]
  %v37 = vld [vmem:[%s0 + $0x5c] sm:$0xf]
  %v38 = vld [vmem:[%s0 + $0x60] sm:$0xf]
  %v39 = vld [vmem:[%s0 + $0x64] sm:$0xf]
  %v40 = vld [vmem:[%s0 + $0x68] sm:$0xf]
  %v41 = vld [vmem:[%s0 + $0x6c] sm:$0xf]
  %v42 = vld [vmem:[%s0 + $0x70] sm:$0xf]
  %v43 = vld [vmem:[%s0 + $0x74] sm:$0xf]
  %v44 = vld [vmem:[%s0 + $0x78] sm:$0xf]
  %v45 = vld [vmem:[%s0 + $0x7c] sm:$0xf]
  %v46 = vld [vmem:[%s0 + $0x80] sm:$0xf]
  %v47 = vld [vmem:[%s0 + $0x84] sm:$0xf]
  %v48 = vld [vmem:[%s0 + $0x88] sm:$0xf]
  %v49 = vld [vmem:[%s0 + $0x8c] sm:$0xf]
  %v50 = vld [vmem:[%s0 + $0x90] sm:$0xf]
  %v51 = vld [vmem:[%s0 + $0x94] sm:$0xf]
  %v52 = vld [vmem:[%s0 + $0x98] sm:$0xf]
  %v53 = vld [vmem:[%s0 + $0x9c] sm:$0xf]
  %v54 = vld [vmem:[%s0 + $0xa0] sm:$0xf]
  %v55 = vld [vmem:[%s0 + $0xa4] sm:$0xf]
  %v56 = vld [vmem:[%s0 + $0xa8] sm:$0xf]
  %v57 = vld [vmem:[%s0 + $0xac] sm:$0xf]
  %v58 = vld [vmem:[%s0 + $0xb0] sm:$0xf]
  %v59 = vld [vmem:[%s0 + $0xb4] sm:$0xf]
  %v60 = vld [vmem:[%s0 + $0xb8] sm:$0xf]
  %v61 = vld [vmem:[%s0 + $0xbc] sm:$0xf]
  %v62 = vld [vmem:[%s0 + $0xc0] sm:$0xf]
  %v63 = vld [vmem:[%s0 + $0xc4] sm:$0xf]
  %v64 = vld [vmem:[%s0 + $0xc8] sm:$0xf]
  %v65 = vld [vmem:[%s0 + $0xcc] sm:$0xf]
  %v66 = vld [vmem:[%s0 + $0xd0] sm:$0xf]
  %v67 = vld [vmem:[%s0 + $0xd4] sm:$0xf]
  %v68 = vld [vmem:[%s0 + $0xd8] sm:$0xf]
  %v69 = vld [vmem:[%s0 + $0xdc] sm:$0xf]
  %v70 = vld [vmem:[%s0 + $0xe0] sm:$0xf]
  %v71 = vld [vmem:[%s0 + $0xe4] sm:$0xf]
  %v72 = vld [vmem:[%s0 + $0xe8] sm:$0xf]
  %v73 = vld [vmem:[%s0 + $0xec] sm:$0xf]
  %v74 = vld [vmem:[%s0 + $0xf0] sm:$0xf]
  %v75 = vld [vmem:[%s0 + $0xf4] sm:$0xf]
  %v76 = vld [vmem:[%s0 + $0xf8] sm:$0xf]
  %v77 = vld [vmem:[%s0 + $0xfc] sm:$0xf]
  %v78 = vunpack.c.l.bf16 %v14
  %v79 = vunpack.c.l.bf16 %v15
  %v80 = vunpack.c.l.bf16 %v16
  %v81 = vunpack.c.l.bf16 %v17
  %v82 = vunpack.c.l.bf16 %v18
  %v83 = vunpack.c.l.bf16 %v19
  %v84 = vunpack.c.l.bf16 %v20
  %v85 = vunpack.c.l.bf16 %v21
  %v86 = vunpack.c.l.bf16 %v22
  %v87 = vunpack.c.l.bf16 %v23
  %v88 = vunpack.c.l.bf16 %v24
  %v89 = vunpack.c.l.bf16 %v25
  %v90 = vunpack.c.l.bf16 %v26
  %v91 = vunpack.c.l.bf16 %v27
  %v92 = vunpack.c.l.bf16 %v28
  %v93 = vunpack.c.l.bf16 %v29
  %v94 = vunpack.c.l.bf16 %v30
  %v95 = vunpack.c.l.bf16 %v31
  %v96 = vunpack.c.l.bf16 %v32
  %v97 = vunpack.c.l.bf16 %v33
  %v98 = vunpack.c.l.bf16 %v34
  %v99 = vunpack.c.l.bf16 %v35
  %v100 = vunpack.c.l.bf16 %v36
  %v101 = vunpack.c.l.bf16 %v37
  %v102 = vunpack.c.l.bf16 %v38
  %v103 = vunpack.c.l.bf16 %v39
  %v104 = vunpack.c.l.bf16 %v40
  %v105 = vunpack.c.l.bf16 %v41
  %v106 = vunpack.c.l.bf16 %v42
  %v107 = vunpack.c.l.bf16 %v43
  %v108 = vunpack.c.l.bf16 %v44
  %v109 = vunpack.c.l.bf16 %v45
  %v110 = vunpack.c.l.bf16 %v46
  %v111 = vunpack.c.l.bf16 %v47
  %v112 = vunpack.c.l.bf16 %v48
  %v113 = vunpack.c.l.bf16 %v49
  %v114 = vunpack.c.l.bf16 %v50
  %v115 = vunpack.c.l.bf16 %v51
  %v116 = vunpack.c.l.bf16 %v52
  %v117 = vunpack.c.l.bf16 %v53
  %v118 = vunpack.c.l.bf16 %v54
  %v119 = vunpack.c.l.bf16 %v55
  %v120 = vunpack.c.l.bf16 %v56
  %v121 = vunpack.c.l.bf16 %v57
  %v122 = vunpack.c.l.bf16 %v58
  %v123 = vunpack.c.l.bf16 %v59
  %v124 = vunpack.c.l.bf16 %v60
  %v125 = vunpack.c.l.bf16 %v61
  %v126 = vunpack.c.l.bf16 %v62
  %v127 = vunpack.c.l.bf16 %v63
  %v128 = vunpack.c.l.bf16 %v64
  %v129 = vunpack.c.l.bf16 %v65
  %v130 = vunpack.c.l.bf16 %v66
  %v131 = vunpack.c.l.bf16 %v67
  %v132 = vunpack.c.l.bf16 %v68
  %v133 = vunpack.c.l.bf16 %v69
  %v134 = vunpack.c.l.bf16 %v70
  %v135 = vunpack.c.l.bf16 %v71
  %v136 = vunpack.c.l.bf16 %v72
  %v137 = vunpack.c.l.bf16 %v73
  %v138 = vunpack.c.l.bf16 %v74
  %v139 = vunpack.c.l.bf16 %v75
  %v140 = vunpack.c.l.bf16 %v76
  %v141 = vunpack.c.l.bf16 %v77
  %v142 = vld [vmem:[%s1] sm:$0x1]
  %v144 = vlaneseq
  %v145 = vshrl.u32 %v144, 7
  %v146 = vsub.s32 0, %v145
  %v147 = vrot.slane %v142, %v146
  %v149 = vmul.f32 %v78, %v147
  %v150 = vmul.f32 %v79, %v147
  %v151 = vmul.f32 %v80, %v147
  %v152 = vmul.f32 %v81, %v147
  %v153 = vmul.f32 %v82, %v147
  %v154 = vmul.f32 %v83, %v147
  %v155 = vmul.f32 %v84, %v147
  %v156 = vmul.f32 %v85, %v147
  %v157 = vmul.f32 %v86, %v147
  %v158 = vmul.f32 %v87, %v147
  %v159 = vmul.f32 %v88, %v147
  %v160 = vmul.f32 %v89, %v147
  %v161 = vmul.f32 %v90, %v147
  %v162 = vmul.f32 %v91, %v147
  %v163 = vmul.f32 %v92, %v147
  %v164 = vmul.f32 %v93, %v147
  %v165 = vmul.f32 %v94, %v147
  %v166 = vmul.f32 %v95, %v147
  %v167 = vmul.f32 %v96, %v147
  %v168 = vmul.f32 %v97, %v147
  %v169 = vmul.f32 %v98, %v147
  %v170 = vmul.f32 %v99, %v147
  %v171 = vmul.f32 %v100, %v147
  %v172 = vmul.f32 %v101, %v147
  %v173 = vmul.f32 %v102, %v147
  %v174 = vmul.f32 %v103, %v147
  %v175 = vmul.f32 %v104, %v147
  %v176 = vmul.f32 %v105, %v147
  %v177 = vmul.f32 %v106, %v147
  %v178 = vmul.f32 %v107, %v147
  %v179 = vmul.f32 %v108, %v147
  %v180 = vmul.f32 %v109, %v147
  %v181 = vmul.f32 %v110, %v147
  %v182 = vmul.f32 %v111, %v147
  %v183 = vmul.f32 %v112, %v147
  %v184 = vmul.f32 %v113, %v147
  %v185 = vmul.f32 %v114, %v147
  %v186 = vmul.f32 %v115, %v147
  %v187 = vmul.f32 %v116, %v147
  %v188 = vmul.f32 %v117, %v147
  %v189 = vmul.f32 %v118, %v147
  %v190 = vmul.f32 %v119, %v147
  %v191 = vmul.f32 %v120, %v147
  %v192 = vmul.f32 %v121, %v147
  %v193 = vmul.f32 %v122, %v147
  %v194 = vmul.f32 %v123, %v147
  %v195 = vmul.f32 %v124, %v147
  %v196 = vmul.f32 %v125, %v147
  %v197 = vmul.f32 %v126, %v147
  %v198 = vmul.f32 %v127, %v147
  %v199 = vmul.f32 %v128, %v147
  %v200 = vmul.f32 %v129, %v147
  %v201 = vmul.f32 %v130, %v147
  %v202 = vmul.f32 %v131, %v147
  %v203 = vmul.f32 %v132, %v147
  %v204 = vmul.f32 %v133, %v147
  %v205 = vmul.f32 %v134, %v147
  %v206 = vmul.f32 %v135, %v147
  %v207 = vmul.f32 %v136, %v147
  %v208 = vmul.f32 %v137, %v147
  %v209 = vmul.f32 %v138, %v147
  %v210 = vmul.f32 %v139, %v147
  %v211 = vmul.f32 %v140, %v147
  %v212 = vmul.f32 %v141, %v147
  %v213 = vld [vmem:[%s2] sm:$0x1]
  %v215 = vlaneseq
  %v216 = vshrl.u32 %v215, 7
  %v217 = vsub.s32 0, %v216
  %v218 = vrot.slane %v213, %v217
  %v220 = vadd.f32 %v149, %v218
  %v221 = vadd.f32 %v150, %v218
  %v222 = vadd.f32 %v151, %v218
  %v223 = vadd.f32 %v152, %v218
  %v224 = vadd.f32 %v153, %v218
  %v225 = vadd.f32 %v154, %v218
  %v226 = vadd.f32 %v155, %v218
  %v227 = vadd.f32 %v156, %v218
  %v228 = vadd.f32 %v157, %v218
  %v229 = vadd.f32 %v158, %v218
  %v230 = vadd.f32 %v159, %v218
  %v231 = vadd.f32 %v160, %v218
  %v232 = vadd.f32 %v161, %v218
  %v233 = vadd.f32 %v162, %v218
  %v234 = vadd.f32 %v163, %v218
  %v235 = vadd.f32 %v164, %v218
  %v236 = vadd.f32 %v165, %v218
  %v237 = vadd.f32 %v166, %v218
  %v238 = vadd.f32 %v167, %v218
  %v239 = vadd.f32 %v168, %v218
  %v240 = vadd.f32 %v169, %v218
  %v241 = vadd.f32 %v170, %v218
  %v242 = vadd.f32 %v171, %v218
  %v243 = vadd.f32 %v172, %v218
  %v244 = vadd.f32 %v173, %v218
  %v245 = vadd.f32 %v174, %v218
  %v246 = vadd.f32 %v175, %v218
  %v247 = vadd.f32 %v176, %v218
  %v248 = vadd.f32 %v177, %v218
  %v249 = vadd.f32 %v178, %v218
  %v250 = vadd.f32 %v179, %v218
  %v251 = vadd.f32 %v180, %v218
  %v252 = vadd.f32 %v181, %v218
  %v253 = vadd.f32 %v182, %v218
  %v254 = vadd.f32 %v183, %v218
  %v255 = vadd.f32 %v184, %v218
  %v256 = vadd.f32 %v185, %v218
  %v257 = vadd.f32 %v186, %v218
  %v258 = vadd.f32 %v187, %v218
  %v259 = vadd.f32 %v188, %v218
  %v260 = vadd.f32 %v189, %v218
  %v261 = vadd.f32 %v190, %v218
  %v262 = vadd.f32 %v191, %v218
  %v263 = vadd.f32 %v192, %v218
  %v264 = vadd.f32 %v193, %v218
  %v265 = vadd.f32 %v194, %v218
  %v266 = vadd.f32 %v195, %v218
  %v267 = vadd.f32 %v196, %v218
  %v268 = vadd.f32 %v197, %v218
  %v269 = vadd.f32 %v198, %v218
  %v270 = vadd.f32 %v199, %v218
  %v271 = vadd.f32 %v200, %v218
  %v272 = vadd.f32 %v201, %v218
  %v273 = vadd.f32 %v202, %v218
  %v274 = vadd.f32 %v203, %v218
  %v275 = vadd.f32 %v204, %v218
  %v276 = vadd.f32 %v205, %v218
  %v277 = vadd.f32 %v206, %v218
  %v278 = vadd.f32 %v207, %v218
  %v279 = vadd.f32 %v208, %v218
  %v280 = vadd.f32 %v209, %v218
  %v281 = vadd.f32 %v210, %v218
  %v282 = vadd.f32 %v211, %v218
  %v283 = vadd.f32 %v212, %v218
  %284 = vst [vmem:[%s3] sm:$0xff] %v220
  %285 = vst [vmem:[%s3 + $0x8] sm:$0xff] %v221
  %286 = vst [vmem:[%s3 + $0x10] sm:$0xff] %v222
  %287 = vst [vmem:[%s3 + $0x18] sm:$0xff] %v223
  %288 = vst [vmem:[%s3 + $0x20] sm:$0xff] %v224
  %289 = vst [vmem:[%s3 + $0x28] sm:$0xff] %v225
  %290 = vst [vmem:[%s3 + $0x30] sm:$0xff] %v226
  %291 = vst [vmem:[%s3 + $0x38] sm:$0xff] %v227
  %292 = vst [vmem:[%s3 + $0x40] sm:$0xff] %v228
  %293 = vst [vmem:[%s3 + $0x48] sm:$0xff] %v229
  %294 = vst [vmem:[%s3 + $0x50] sm:$0xff] %v230
  %295 = vst [vmem:[%s3 + $0x58] sm:$0xff] %v231
  %296 = vst [vmem:[%s3 + $0x60] sm:$0xff] %v232
  %297 = vst [vmem:[%s3 + $0x68] sm:$0xff] %v233
  %298 = vst [vmem:[%s3 + $0x70] sm:$0xff] %v234
  %299 = vst [vmem:[%s3 + $0x78] sm:$0xff] %v235
  %300 = vst [vmem:[%s3 + $0x80] sm:$0xff] %v236
  %301 = vst [vmem:[%s3 + $0x88] sm:$0xff] %v237
  %302 = vst [vmem:[%s3 + $0x90] sm:$0xff] %v238
  %303 = vst [vmem:[%s3 + $0x98] sm:$0xff] %v239
  %304 = vst [vmem:[%s3 + $0xa0] sm:$0xff] %v240
  %305 = vst [vmem:[%s3 + $0xa8] sm:$0xff] %v241
  %306 = vst [vmem:[%s3 + $0xb0] sm:$0xff] %v242
  %307 = vst [vmem:[%s3 + $0xb8] sm:$0xff] %v243
  %308 = vst [vmem:[%s3 + $0xc0] sm:$0xff] %v244
  %309 = vst [vmem:[%s3 + $0xc8] sm:$0xff] %v245
  %310 = vst [vmem:[%s3 + $0xd0] sm:$0xff] %v246
  %311 = vst [vmem:[%s3 + $0xd8] sm:$0xff] %v247
  %312 = vst [vmem:[%s3 + $0xe0] sm:$0xff] %v248
  %313 = vst [vmem:[%s3 + $0xe8] sm:$0xff] %v249
  %314 = vst [vmem:[%s3 + $0xf0] sm:$0xff] %v250
  %315 = vst [vmem:[%s3 + $0xf8] sm:$0xff] %v251
  %316 = vst [vmem:[%s3 + $0x100] sm:$0xff] %v252
  %317 = vst [vmem:[%s3 + $0x108] sm:$0xff] %v253
  %318 = vst [vmem:[%s3 + $0x110] sm:$0xff] %v254
  %319 = vst [vmem:[%s3 + $0x118] sm:$0xff] %v255
  %320 = vst [vmem:[%s3 + $0x120] sm:$0xff] %v256
  %321 = vst [vmem:[%s3 + $0x128] sm:$0xff] %v257
  %322 = vst [vmem:[%s3 + $0x130] sm:$0xff] %v258
  %323 = vst [vmem:[%s3 + $0x138] sm:$0xff] %v259
  %324 = vst [vmem:[%s3 + $0x140] sm:$0xff] %v260
  %325 = vst [vmem:[%s3 + $0x148] sm:$0xff] %v261
  %326 = vst [vmem:[%s3 + $0x150] sm:$0xff] %v262
  %327 = vst [vmem:[%s3 + $0x158] sm:$0xff] %v263
  %328 = vst [vmem:[%s3 + $0x160] sm:$0xff] %v264
  %329 = vst [vmem:[%s3 + $0x168] sm:$0xff] %v265
  %330 = vst [vmem:[%s3 + $0x170] sm:$0xff] %v266
  %331 = vst [vmem:[%s3 + $0x178] sm:$0xff] %v267
  %332 = vst [vmem:[%s3 + $0x180] sm:$0xff] %v268
  %333 = vst [vmem:[%s3 + $0x188] sm:$0xff] %v269
  %334 = vst [vmem:[%s3 + $0x190] sm:$0xff] %v270
  %335 = vst [vmem:[%s3 + $0x198] sm:$0xff] %v271
  %336 = vst [vmem:[%s3 + $0x1a0] sm:$0xff] %v272
  %337 = vst [vmem:[%s3 + $0x1a8] sm:$0xff] %v273
  %338 = vst [vmem:[%s3 + $0x1b0] sm:$0xff] %v274
  %339 = vst [vmem:[%s3 + $0x1b8] sm:$0xff] %v275
  %340 = vst [vmem:[%s3 + $0x1c0] sm:$0xff] %v276
  %341 = vst [vmem:[%s3 + $0x1c8] sm:$0xff] %v277
  %342 = vst [vmem:[%s3 + $0x1d0] sm:$0xff] %v278
  %343 = vst [vmem:[%s3 + $0x1d8] sm:$0xff] %v279
  %344 = vst [vmem:[%s3 + $0x1e0] sm:$0xff] %v280
  %345 = vst [vmem:[%s3 + $0x1e8] sm:$0xff] %v281
  %346 = vst [vmem:[%s3 + $0x1f0] sm:$0xff] %v282
  %347 = vst [vmem:[%s3 + $0x1f8] sm:$0xff] %v283
  // Predicated region
  $region14: #{unet_skip_conn_block.7} parent=0 // pred_check
    _
  $region15: #{unet_skip_conn_block.7} parent=0 // pred_check_branch
    %349 = sbr.rel (0) target = $region17
  $region16: #{unet_skip_conn_block.7} parent=0 // pred_region
    _
  $region17: #{unet_skip_conn_block.7} parent=0 // pred_fallthru
    _
  // Predicated region
  $region18: #{unet_skip_conn_block.7} parent=0 // pred_check
    _
  $region19: #{unet_skip_conn_block.7} parent=0 // pred_check_branch
    %351 = sbr.rel (0) target = $region21
  $region20: #{unet_skip_conn_block.7} parent=0 // pred_region
    _
  $region21: #{unet_skip_conn_block.7} parent=0 // pred_fallthru
    _

</llo_original>
